<compile_context>
chip_gen: v5e
topology: v5e:2x2
jax: 0.10.0
libtpu: 0.0.40
codegen_flags: <defaults>
</compile_context>

<pallas_src>
import functools

import jax
import jax.numpy as jnp
from jax import lax
from jax.experimental import pallas as pl
from jax.experimental.pallas import tpu as pltpu


# ----------------------------------------------------------------------------
# Small helpers
# ----------------------------------------------------------------------------
def _cdiv(a, b):
    return -(-a // b)


def _round_up(x, m):
    return _cdiv(x, m) * m


@functools.lru_cache(maxsize=None)
def _tile_config():
    """(tm_cap, tn_cap, tk_cap, vmem_limit_bytes), generation aware."""
    try:
        vmem_bytes = pltpu.get_tpu_info().vmem_capacity_bytes
    except Exception:
        vmem_bytes = 64 << 20
    if vmem_bytes >= (100 << 20):          # v5e / v6e: 128 MiB physical VMEM
        return 1024, 512, 1024, 64 << 20
    return 1024, 512, 1024, 40 << 20       # v7x: 64 MiB physical VMEM


def _choose_tiles(dim, cap, min_blocks=1):
    """Pad `dim` to a multiple of 128 and pick a 128-multiple tile <= cap.

    Prefers a tile that divides the padded dim exactly (no extra padding) and
    yields at least `min_blocks` blocks (so v7x's two TensorCores both get
    work when this is the only parallel grid axis)."""
    p = _round_up(dim, 128)
    t = min(cap, p)
    while t >= 128:
        if p % t == 0 and p // t >= min_blocks:
            return p, t
        t -= 128
    nb = max(min_blocks, _cdiv(p, cap))
    t = _round_up(_cdiv(p, nb), 128)
    return t * _cdiv(p, t), t


def _pad2d(x, rows, cols):
    r, c = x.shape
    if r == rows and c == cols:
        return x                            # no-op when already aligned
    return jnp.pad(x, ((0, rows - r), (0, cols - c)))


# ----------------------------------------------------------------------------
# Generic tiled Pallas matmul with optional transposed operands and a fused
# (bias, ReLU) epilogue.  bf16 MXU inputs (cast per-tile), f32 accumulation.
# ----------------------------------------------------------------------------
_DOT_DIMS = {
    "nn": (((1,), (0,)), ((), ())),   # C = A @ B      A:(M,K)  B:(K,N)
    "nt": (((1,), (1,)), ((), ())),   # C = A @ B^T    A:(M,K)  B:(N,K)
    "tn": (((0,), (0,)), ((), ())),   # C = A^T @ B    A:(K,M)  B:(K,N)
}

_PALLAS_MIN_WORK = 1 << 22            # below this m*n*k, XLA beats padded Pallas


def _make_matmul_kernel(dims, has_bias, relu):
    dn = _DOT_DIMS[dims]

    def kernel(*refs):
        if has_bias:
            a_ref, b_ref, bias_ref, o_ref, acc_ref = refs
        else:
            a_ref, b_ref, o_ref, acc_ref = refs

        @pl.when(pl.program_id(2) == 0)
        def _():
            acc_ref[...] = jnp.zeros_like(acc_ref)

        # Per-tile bf16 cast (free VPU work) -> no extra XLA cast/pad HBM pass.
        a = a_ref[...].astype(jnp.bfloat16)
        b = b_ref[...].astype(jnp.bfloat16)
        acc_ref[...] += lax.dot_general(a, b, dn,
                                        preferred_element_type=jnp.float32)

        @pl.when(pl.program_id(2) == pl.num_programs(2) - 1)
        def _():
            r = acc_ref[...]
            if has_bias:
                r = r + bias_ref[...]         # (1, tn) broadcast over rows
            if relu:
                r = jnp.maximum(r, 0.0)
            o_ref[...] = r.astype(o_ref.dtype)

    return kernel


def _mnk(a, b, dims):
    if dims == "nn":
        return a.shape[0], b.shape[1], a.shape[1]
    if dims == "nt":
        return a.shape[0], b.shape[0], a.shape[1]
    return a.shape[1], b.shape[1], a.shape[0]       # "tn"


def _pallas_matmul(a, b, dims, bias, relu, out_dtype):
    m, n, k = _mnk(a, b, dims)
    tm_cap, tn_cap, tk_cap, vmem_limit = _tile_config()

    n_pad, tn = _choose_tiles(n, tn_cap)
    # If the N grid is 1, split M into >=2 blocks so both v7x cores get work.
    min_mb = 2 if (n_pad // tn == 1 and m >= 256) else 1
    m_pad, tm = _choose_tiles(m, tm_cap, min_blocks=min_mb)
    k_pad, tk = _choose_tiles(k, tk_cap)

    if dims == "nn":
        a_p, b_p = _pad2d(a, m_pad, k_pad), _pad2d(b, k_pad, n_pad)
        a_spec = pl.BlockSpec((tm, tk), lambda i, j, kk: (i, kk))
        b_spec = pl.BlockSpec((tk, tn), lambda i, j, kk: (kk, j))
    elif dims == "nt":
        a_p, b_p = _pad2d(a, m_pad, k_pad), _pad2d(b, n_pad, k_pad)
        a_spec = pl.BlockSpec((tm, tk), lambda i, j, kk: (i, kk))
        b_spec = pl.BlockSpec((tn, tk), lambda i, j, kk: (j, kk))
    else:  # "tn"
        a_p, b_p = _pad2d(a, k_pad, m_pad), _pad2d(b, k_pad, n_pad)
        a_spec = pl.BlockSpec((tk, tm), lambda i, j, kk: (kk, i))
        b_spec = pl.BlockSpec((tk, tn), lambda i, j, kk: (kk, j))

    has_bias = bias is not None
    inputs = [a_p, b_p]
    in_specs = [a_spec, b_spec]
    if has_bias:
        bias_p = jnp.pad(bias.astype(jnp.float32), (0, n_pad - n)).reshape(1, n_pad)
        inputs.append(bias_p)
        in_specs.append(pl.BlockSpec((1, tn), lambda i, j, kk: (0, j)))

    out = pl.pallas_call(
        _make_matmul_kernel(dims, has_bias, relu),
        out_shape=jax.ShapeDtypeStruct((m_pad, n_pad), out_dtype),
        grid_spec=pltpu.PrefetchScalarGridSpec(
            num_scalar_prefetch=0,
            grid=(m_pad // tm, n_pad // tn, k_pad // tk),   # reduction axis last
            in_specs=in_specs,
            out_specs=pl.BlockSpec((tm, tn), lambda i, j, kk: (i, j)),
            scratch_shapes=[pltpu.VMEM((tm, tn), jnp.float32)],
        ),
        compiler_params=pltpu.CompilerParams(
            dimension_semantics=("parallel", "parallel", "arbitrary"),
            vmem_limit_bytes=vmem_limit,
        ),
    )(*inputs)
    return out[:m, :n]


def matmul(a, b, dims="nn", bias=None, relu=False, out_dtype=jnp.float32):
    """C = op(a) . op(b) (+ bias)(+ ReLU).  Big shapes -> Pallas, small -> XLA."""
    m, n, k = _mnk(a, b, dims)
    if m * n * k < _PALLAS_MIN_WORK:
        out = lax.dot_general(a.astype(jnp.float32), b.astype(jnp.float32),
                              _DOT_DIMS[dims], preferred_element_type=jnp.float32)
        if bias is not None:
            out = out + bias
        if relu:
            out = jnp.maximum(out, 0.0)
        return out.astype(out_dtype)
    return _pallas_matmul(a, b, dims, bias, relu, out_dtype)


# ----------------------------------------------------------------------------
# Fused GCN aggregation layer: out = [ReLU](a @ b + bias), differentiable.
# Backward uses the transposed-operand kernels (no materialised .T) and emits
# dA in A's dtype (bf16), keeping the dominant N^2 writeback at 2 bytes/elem.
# ----------------------------------------------------------------------------
@functools.partial(jax.custom_vjp, nondiff_argnums=(3,))
def gcn_aggregate(a, b, bias, relu):
    return matmul(a, b, bias=bias, relu=relu)


def _gcn_agg_fwd(a, b, bias, relu):
    out = matmul(a, b, bias=bias, relu=relu)
    return out, (a, b, out if relu else None)


def _gcn_agg_bwd(relu, res, g):
    a, b, out = res
    if relu:
        g = jnp.where(out > 0, g, 0.0)
    da = matmul(g, b, dims="nt", out_dtype=a.dtype)    # g @ b^T  (bf16 out)
    db = matmul(a, g, dims="tn", out_dtype=b.dtype)    # a^T @ g
    dbias = jnp.sum(g, axis=0)
    return da, db, dbias


gcn_aggregate.defvjp(_gcn_agg_fwd, _gcn_agg_bwd)


# ----------------------------------------------------------------------------
# Lane-dense Pallas Adam(+clamp) kernel (PyTorch Adam semantics), row-gridded,
# in-place (input_output_aliases), bias-correction factors as SMEM scalars.
# ----------------------------------------------------------------------------
def _adam_clamp_kernel(scal_ref, w_ref, g_ref, m_ref, v_ref,
                       w_out, m_out, v_out, *, lr, b1, b2, eps):
    bc1 = scal_ref[0]                       # 1 / (1 - b1**t)
    bc2 = scal_ref[1]                       # 1 / (1 - b2**t)
    g = g_ref[...]
    m = b1 * m_ref[...] + (1.0 - b1) * g
    v = b2 * v_ref[...] + (1.0 - b2) * g * g
    upd = lr * (m * bc1) / (jnp.sqrt(v * bc2) + eps)
    w_out[...] = jnp.clip(w_ref[...] - upd, 0.0, 1.0)
    m_out[...] = m
    v_out[...] = v


def adam_clamp_pallas(w, g, m, v, t, lr=0.01, betas=(0.9, 0.999), eps=1e-8):
    """One bias-corrected Adam step (step index t >= 1), then clamp(0, 1)."""
    e = w.shape[0]
    cols = 128
    rows = _round_up(_cdiv(e, cols), 8)
    block_rows = min(rows, 512)
    rows_pad = _round_up(rows, block_rows)
    pad = rows_pad * cols - e

    def to2d(x):
        return jnp.pad(x, (0, pad)).reshape(rows_pad, cols)

    b1, b2 = betas
    t_f = jnp.asarray(t, jnp.float32)
    scal = jnp.stack([1.0 / (1.0 - jnp.asarray(b1, jnp.float32) ** t_f),
                      1.0 / (1.0 - jnp.asarray(b2, jnp.float32) ** t_f)]
                     ).astype(jnp.float32)

    kern = functools.partial(_adam_clamp_kernel, lr=lr, b1=b1, b2=b2, eps=eps)
    blk = pl.BlockSpec((block_rows, cols), lambda i: (i, 0))
    w2, m2, v2 = pl.pallas_call(
        kern,
        grid=(rows_pad // block_rows,),
        out_shape=[jax.ShapeDtypeStruct((rows_pad, cols), jnp.float32)] * 3,
        in_specs=[pl.BlockSpec(memory_space=pltpu.MemorySpace.SMEM)] + [blk] * 4,
        out_specs=[blk] * 3,
        input_output_aliases={1: 0, 3: 1, 4: 2},     # w, m, v updated in place
        compiler_params=pltpu.CompilerParams(dimension_semantics=("parallel",)),
    )(scal, to2d(w), to2d(g), to2d(m), to2d(v))
    return w2.reshape(-1)[:e], m2.reshape(-1)[:e], v2.reshape(-1)[:e]


# ----------------------------------------------------------------------------
# Plain-JAX glue: adjacency build (PyG gcn_norm), loss, ProGNN driver.
# ----------------------------------------------------------------------------
def build_normalized_adj(edge_index, edge_weight, num_nodes, dtype=jnp.bfloat16):
    """Dense PyG gcn_norm (add_self_loops=True, fill value 1).

    The D^-1/2 scaling and the bf16 cast are fused into ONE XLA elementwise
    pass; the bf16 result is reused by every forward/backward aggregation."""
    # TODO(synk): the dense scatter-add (and its gather transpose in the VJP)
    # stays in XLA; Pallas has no clean scatter primitive on TPU.
    src, dst = edge_index[0], edge_index[1]
    a = jnp.zeros((num_nodes, num_nodes), jnp.float32)
    a = a.at[dst, src].add(edge_weight)              # row = target, col = source
    a = a + jnp.eye(num_nodes, dtype=jnp.float32)    # self loops, weight 1
    deg_inv_sqrt = lax.rsqrt(a.sum(axis=1))          # deg >= 1 (self loops)
    return (a * deg_inv_sqrt[:, None] * deg_inv_sqrt[None, :]).astype(dtype)


def backbone_forward(a_hat, x, w1, b1, w2, b2):
    """Two GCNConv layers; aggregation + bias (+ ReLU) fused in one kernel."""
    h = gcn_aggregate(a_hat, x @ w1, b1, True)       # conv1 -> ReLU (fused)
    return gcn_aggregate(a_hat, h @ w2, b2, False)   # conv2 (bias fused)


def recon_loss(edge_weight, x, edge_index, train_mask, labels, params, gamma):
    a_hat = build_normalized_adj(edge_index, edge_weight, x.shape[0])
    logits = backbone_forward(a_hat, x, *params)
    logp = jax.nn.log_softmax(logits, axis=-1)
    nll = -jnp.take_along_axis(logp, labels[:, None], axis=-1)[:, 0]
    mask = train_mask.astype(jnp.float32)
    loss_gcn = jnp.sum(nll * mask) / jnp.sum(mask)   # CE over masked nodes
    loss_fro = jnp.linalg.norm(edge_weight)          # torch.norm(w, 'fro'), 1-D
    return -loss_fro + gamma * loss_gcn


def recon_edge_weight(x, edge_index, train_mask, labels, params,
                      epochs=1, lr=0.01, gamma=1.0):
    num_edges = edge_index.shape[1]
    w0 = jnp.ones((num_edges,), jnp.float32)
    grad_fn = jax.grad(recon_loss)

    def body(step, carry):
        w, m, v = carry
        g = grad_fn(w, x, edge_index, train_mask, labels, params, gamma)
        return adam_clamp_pallas(w, g, m, v, step + 1, lr=lr)

    w, _, _ = lax.fori_loop(0, epochs, body,
                            (w0, jnp.zeros_like(w0), jnp.zeros_like(w0)))
    return w


def prognn_forward(x, edge_index, labels, train_mask, params,
                   epochs=1, lr=0.01, gamma=1.0):
    """ProGNN.forward: recon edge weights, then backbone forward with them."""
    w_est = recon_edge_weight(x, edge_index, train_mask, labels, params,
                              epochs=epochs, lr=lr, gamma=gamma)
    a_hat = build_normalized_adj(edge_index, lax.stop_gradient(w_est),
                                 x.shape[0])
    return backbone_forward(a_hat, x, *params)


prognn_forward_jit = jax.jit(prognn_forward,
                             static_argnames=("epochs", "lr", "gamma"))
recon_edge_weight_jit = jax.jit(recon_edge_weight,
                                static_argnames=("epochs", "lr", "gamma"))


# Pure-f32 JAX mirror of the backbone (validation only).
def backbone_forward_ref(a_hat_f32, x, w1, b1, w2, b2):
    h = jnp.maximum(a_hat_f32 @ (x @ w1) + b1, 0.0)
    return a_hat_f32 @ (h @ w2) + b2


def glorot(key, shape):
    fan_in, fan_out = shape
    limit = jnp.sqrt(6.0 / (fan_in + fan_out))
    return jax.random.uniform(key, shape, jnp.float32, -limit, limit)


if __name__ == "__main__":
    N, IN_FEATS, H_FEATS, NUM_CLASSES, E = 512, 128, 128, 8, 4096

    key = jax.random.PRNGKey(0)
    k_x, k_src, k_dst, k_lbl, k_w1, k_w2, k_ma, k_mb, k_g = jax.random.split(key, 9)

    x = jax.random.normal(k_x, (N, IN_FEATS), jnp.float32)
    src = jax.random.randint(k_src, (E,), 0, N, jnp.int32)
    dst = jax.random.randint(k_dst, (E,), 0, N, jnp.int32)
    edge_index = jnp.stack([src, dst], axis=0)               # [2, E]
    labels = jax.random.randint(k_lbl, (N,), 0, NUM_CLASSES, jnp.int32)
    train_mask = jnp.arange(N) < (N // 2)                    # first half trains

    params = (
        glorot(k_w1, (IN_FEATS, H_FEATS)),                   # conv1 weight
        jnp.zeros((H_FEATS,), jnp.float32),                  # conv1 bias
        glorot(k_w2, (H_FEATS, NUM_CLASSES)),                # conv2 weight
        jnp.zeros((NUM_CLASSES,), jnp.float32),              # conv2 bias
    )

    # End-to-end ProGNN forward (Adam recon step + backbone); the N x N
    # aggregations and the Adam update run on the Pallas kernels.
    logits = prognn_forward_jit(x, edge_index, labels, train_mask, params)
    logits = jax.block_until_ready(logits)
    assert logits.shape == (N, NUM_CLASSES)

    # Check 1: Pallas tiled matmul (all three operand layouts, non-aligned
    # shapes -> padding path) vs XLA bf16 dot with f32 accumulation.
    a_t = jax.random.normal(k_ma, (300, 200), jnp.float32)
    b_t = jax.random.normal(k_mb, (200, 264), jnp.float32)
    want = jnp.dot(a_t.astype(jnp.bfloat16), b_t.astype(jnp.bfloat16),
                   preferred_element_type=jnp.float32)
    got_nn = jax.jit(lambda a, b: matmul(a, b, "nn"))(a_t, b_t)
    got_nt = jax.jit(lambda a, b: matmul(a, b, "nt"))(a_t, b_t.T)
    got_tn = jax.jit(lambda a, b: matmul(a, b, "tn"))(a_t.T, b_t)
    for got in (got_nn, got_nt, got_tn):
        assert jnp.allclose(got, want, atol=1e-2, rtol=1e-2), "matmul mismatch"

    # Check 2: Adam(+clamp) kernel vs the closed-form t=1 update.
    g0 = jax.random.normal(k_g, (E,), jnp.float32) * 0.1
    w_step, _, _ = adam_clamp_pallas(jnp.ones((E,), jnp.float32), g0,
                                     jnp.zeros((E,), jnp.float32),
                                     jnp.zeros((E,), jnp.float32), 1, lr=0.01)
    want_w = jnp.clip(1.0 - 0.01 * g0 / (jnp.abs(g0) + 1e-8), 0.0, 1.0)
    assert jnp.allclose(w_step, want_w, atol=1e-5), "adam mismatch"

    # Check 3: full forward vs a pure-f32 JAX mirror using the same recon
    # weights (bf16 Pallas aggregations vs f32 reference; loose tolerance).
    w_est = recon_edge_weight_jit(x, edge_index, train_mask, labels, params)
    a_ref = build_normalized_adj(edge_index, w_est, N, dtype=jnp.float32)
    ref = backbone_forward_ref(a_ref, x, *params)
    assert jnp.allclose(logits, ref, atol=5e-2, rtol=5e-2), "backbone mismatch"

    print("KERNEL_OK")
</pallas_src>

<mosaic_0001>
module attributes {stable_mosaic.version = 11 : i64} {
  func.func @kernel(%arg0: i32, %arg1: i32, %arg2: i32, %arg3: memref<256x512xbf16, #tpu.memory_space<vmem>>, %arg4: memref<512x128xf32, #tpu.memory_space<vmem>>, %arg5: memref<1x128xf32, #tpu.memory_space<vmem>>, %arg6: memref<256x128xf32, #tpu.memory_space<vmem>>, %arg7: memref<256x128xf32, #tpu.memory_space<vmem>>) attributes {dimension_semantics = [#tpu.dimension_semantics<parallel>, #tpu.dimension_semantics<parallel>, #tpu.dimension_semantics<arbitrary>], iteration_bounds = array<i64: 2, 1, 1>, scalar_prefetch = 0 : i64, scratch_operands = 1 : i64, tpu.core_type = #tpu.core_type<tc>, window_params = [{transform_indices = @transform_0, window_bounds = array<i64: 256, 512>}, {transform_indices = @transform_1, window_bounds = array<i64: 512, 128>}, {transform_indices = @transform_2, window_bounds = array<i64: 1, 128>}, {transform_indices = @transform_3, window_bounds = array<i64: 256, 128>}]} {
    %c0_i32 = arith.constant 0 : i32
    %0 = arith.cmpi eq, %arg2, %c0_i32 : i32
    %1 = arith.extui %0 : i1 to i32
    %c0_i32_0 = arith.constant 0 : i32
    %2 = arith.cmpi ne, %1, %c0_i32_0 : i32
    scf.if %2 {
      %cst_10 = arith.constant 0.000000e+00 : f32
      %13 = vector.broadcast %cst_10 : f32 to vector<256x128xf32>
      %c0_11 = arith.constant 0 : index
      %c0_12 = arith.constant 0 : index
      %14 = vector.load %arg7[%c0_11, %c0_12] : memref<256x128xf32, #tpu.memory_space<vmem>>, vector<256x128xf32>
      tpu.vector_store %arg7[%c0_11, %c0_12], %13 {strides = array<i32>} : memref<256x128xf32, #tpu.memory_space<vmem>>, vector<256x128xf32>,
    } else {
    }
    %c0 = arith.constant 0 : index
    %c0_1 = arith.constant 0 : index
    %3 = vector.load %arg3[%c0, %c0_1] : memref<256x512xbf16, #tpu.memory_space<vmem>>, vector<256x512xbf16>
    %c0_2 = arith.constant 0 : index
    %c0_3 = arith.constant 0 : index
    %4 = vector.load %arg4[%c0_2, %c0_3] : memref<512x128xf32, #tpu.memory_space<vmem>>, vector<512x128xf32>
    %5 = arith.truncf %4 : vector<512x128xf32> to vector<512x128xbf16>
    %c0_4 = arith.constant 0 : index
    %c0_5 = arith.constant 0 : index
    %6 = vector.load %arg7[%c0_4, %c0_5] : memref<256x128xf32, #tpu.memory_space<vmem>>, vector<256x128xf32>
    %cst = arith.constant dense<0.000000e+00> : vector<256x128xf32>
    %7 = tpu.matmul %3, %5, %cst {dimension_numbers = #tpu.dot_dimension_numbers<[1], [0], [0], [1], [0, 0, 1, 1], [], []>} : vector<256x512xbf16>, vector<512x128xbf16>, vector<256x128xf32> -> vector<256x128xf32>
    %8 = arith.addf %6, %7 : vector<256x128xf32>
    %c0_6 = arith.constant 0 : index
    %c0_7 = arith.constant 0 : index
    %9 = vector.load %arg7[%c0_6, %c0_7] : memref<256x128xf32, #tpu.memory_space<vmem>>, vector<256x128xf32>
    tpu.vector_store %arg7[%c0_6, %c0_7], %8 {strides = array<i32>} : memref<256x128xf32, #tpu.memory_space<vmem>>, vector<256x128xf32>,
    %c0_i32_8 = arith.constant 0 : i32
    %10 = arith.cmpi eq, %arg2, %c0_i32_8 : i32
    %11 = arith.extui %10 : i1 to i32
    %c0_i32_9 = arith.constant 0 : i32
    %12 = arith.cmpi ne, %11, %c0_i32_9 : i32
    scf.if %12 {
      %c0_10 = arith.constant 0 : index
      %c0_11 = arith.constant 0 : index
      %13 = vector.load %arg7[%c0_10, %c0_11] : memref<256x128xf32, #tpu.memory_space<vmem>>, vector<256x128xf32>
      %c0_12 = arith.constant 0 : index
      %c0_13 = arith.constant 0 : index
      %14 = vector.load %arg5[%c0_12, %c0_13] : memref<1x128xf32, #tpu.memory_space<vmem>>, vector<1x128xf32>
      %15 = vector.broadcast %14 : vector<1x128xf32> to vector<256x128xf32>
      %16 = arith.addf %13, %15 : vector<256x128xf32>
      %cst_14 = arith.constant 0.000000e+00 : f32
      %17 = vector.broadcast %cst_14 : f32 to vector<256x128xf32>
      %18 = arith.maximumf %16, %17 : vector<256x128xf32>
      %c0_15 = arith.constant 0 : index
      %c0_16 = arith.constant 0 : index
      %19 = vector.load %arg6[%c0_15, %c0_16] : memref<256x128xf32, #tpu.memory_space<vmem>>, vector<256x128xf32>
      tpu.vector_store %arg6[%c0_15, %c0_16], %18 {strides = array<i32>} : memref<256x128xf32, #tpu.memory_space<vmem>>, vector<256x128xf32>,
    } else {
    }
    return
  }
  func.func @transform_0(%arg0: i32, %arg1: i32, %arg2: i32) -> (i32, i32) {
    %c0_i32 = arith.constant 0 : i32
    return %arg0, %arg2 : i32, i32
  }
  func.func @transform_1(%arg0: i32, %arg1: i32, %arg2: i32) -> (i32, i32) {
    %c0_i32 = arith.constant 0 : i32
    return %arg2, %arg1 : i32, i32
  }
  func.func @transform_2(%arg0: i32, %arg1: i32, %arg2: i32) -> (i32, i32) {
    %c0_i32 = arith.constant 0 : i32
    %c0_i32_0 = arith.constant 0 : i32
    return %c0_i32, %arg1 : i32, i32
  }
  func.func @transform_3(%arg0: i32, %arg1: i32, %arg2: i32) -> (i32, i32) {
    %c0_i32 = arith.constant 0 : i32
    return %arg0, %arg1 : i32, i32
  }
}

module attributes {stable_mosaic.version = 11 : i64} {
  func.func @kernel(%arg0: i32, %arg1: i32, %arg2: i32, %arg3: memref<256x128xf32, #tpu.memory_space<vmem>>, %arg4: memref<512x128xf32, #tpu.memory_space<vmem>>, %arg5: memref<256x512xbf16, #tpu.memory_space<vmem>>, %arg6: memref<256x512xf32, #tpu.memory_space<vmem>>) attributes {dimension_semantics = [#tpu.dimension_semantics<parallel>, #tpu.dimension_semantics<parallel>, #tpu.dimension_semantics<arbitrary>], iteration_bounds = array<i64: 2, 1, 1>, scalar_prefetch = 0 : i64, scratch_operands = 1 : i64, tpu.core_type = #tpu.core_type<tc>, window_params = [{transform_indices = @transform_0, window_bounds = array<i64: 256, 128>}, {transform_indices = @transform_1, window_bounds = array<i64: 512, 128>}, {transform_indices = @transform_2, window_bounds = array<i64: 256, 512>}]} {
    %c0_i32 = arith.constant 0 : i32
    %0 = arith.cmpi eq, %arg2, %c0_i32 : i32
    %1 = arith.extui %0 : i1 to i32
    %c0_i32_0 = arith.constant 0 : i32
    %2 = arith.cmpi ne, %1, %c0_i32_0 : i32
    scf.if %2 {
      %cst_10 = arith.constant 0.000000e+00 : f32
      %14 = vector.broadcast %cst_10 : f32 to vector<256x512xf32>
      %c0_11 = arith.constant 0 : index
      %c0_12 = arith.constant 0 : index
      %15 = vector.load %arg6[%c0_11, %c0_12] : memref<256x512xf32, #tpu.memory_space<vmem>>, vector<256x512xf32>
      tpu.vector_store %arg6[%c0_11, %c0_12], %14 {strides = array<i32>} : memref<256x512xf32, #tpu.memory_space<vmem>>, vector<256x512xf32>,
    } else {
    }
    %c0 = arith.constant 0 : index
    %c0_1 = arith.constant 0 : index
    %3 = vector.load %arg3[%c0, %c0_1] : memref<256x128xf32, #tpu.memory_space<vmem>>, vector<256x128xf32>
    %4 = arith.truncf %3 : vector<256x128xf32> to vector<256x128xbf16>
    %c0_2 = arith.constant 0 : index
    %c0_3 = arith.constant 0 : index
    %5 = vector.load %arg4[%c0_2, %c0_3] : memref<512x128xf32, #tpu.memory_space<vmem>>, vector<512x128xf32>
    %6 = arith.truncf %5 : vector<512x128xf32> to vector<512x128xbf16>
    %c0_4 = arith.constant 0 : index
    %c0_5 = arith.constant 0 : index
    %7 = vector.load %arg6[%c0_4, %c0_5] : memref<256x512xf32, #tpu.memory_space<vmem>>, vector<256x512xf32>
    %cst = arith.constant dense<0.000000e+00> : vector<256x512xf32>
    %8 = tpu.matmul %4, %6, %cst {dimension_numbers = #tpu.dot_dimension_numbers<[1], [1], [0], [0], [0, 0, 1, 0], [], []>} : vector<256x128xbf16>, vector<512x128xbf16>, vector<256x512xf32> -> vector<256x512xf32>
    %9 = arith.addf %7, %8 : vector<256x512xf32>
    %c0_6 = arith.constant 0 : index
    %c0_7 = arith.constant 0 : index
    %10 = vector.load %arg6[%c0_6, %c0_7] : memref<256x512xf32, #tpu.memory_space<vmem>>, vector<256x512xf32>
    tpu.vector_store %arg6[%c0_6, %c0_7], %9 {strides = array<i32>} : memref<256x512xf32, #tpu.memory_space<vmem>>, vector<256x512xf32>,
    %c0_i32_8 = arith.constant 0 : i32
    %11 = arith.cmpi eq, %arg2, %c0_i32_8 : i32
    %12 = arith.extui %11 : i1 to i32
    %c0_i32_9 = arith.constant 0 : i32
    %13 = arith.cmpi ne, %12, %c0_i32_9 : i32
    scf.if %13 {
      %c0_10 = arith.constant 0 : index
      %c0_11 = arith.constant 0 : index
      %14 = vector.load %arg6[%c0_10, %c0_11] : memref<256x512xf32, #tpu.memory_space<vmem>>, vector<256x512xf32>
      %15 = arith.truncf %14 : vector<256x512xf32> to vector<256x512xbf16>
      %c0_12 = arith.constant 0 : index
      %c0_13 = arith.constant 0 : index
      %16 = vector.load %arg5[%c0_12, %c0_13] : memref<256x512xbf16, #tpu.memory_space<vmem>>, vector<256x512xbf16>
      tpu.vector_store %arg5[%c0_12, %c0_13], %15 {strides = array<i32>} : memref<256x512xbf16, #tpu.memory_space<vmem>>, vector<256x512xbf16>,
    } else {
    }
    return
  }
  func.func @transform_0(%arg0: i32, %arg1: i32, %arg2: i32) -> (i32, i32) {
    %c0_i32 = arith.constant 0 : i32
    return %arg0, %arg2 : i32, i32
  }
  func.func @transform_1(%arg0: i32, %arg1: i32, %arg2: i32) -> (i32, i32) {
    %c0_i32 = arith.constant 0 : i32
    return %arg1, %arg2 : i32, i32
  }
  func.func @transform_2(%arg0: i32, %arg1: i32, %arg2: i32) -> (i32, i32) {
    %c0_i32 = arith.constant 0 : i32
    return %arg0, %arg1 : i32, i32
  }
}

module attributes {stable_mosaic.version = 11 : i64} {
  func.func @_adam_clamp_kernel(%arg0: i32, %arg1: memref<2xf32, #tpu.memory_space<smem>>, %arg2: memref<32x128xf32, #tpu.memory_space<vmem>>, %arg3: memref<32x128xf32, #tpu.memory_space<vmem>>, %arg4: memref<32x128xf32, #tpu.memory_space<vmem>>, %arg5: memref<32x128xf32, #tpu.memory_space<vmem>>, %arg6: memref<32x128xf32, #tpu.memory_space<vmem>>, %arg7: memref<32x128xf32, #tpu.memory_space<vmem>>, %arg8: memref<32x128xf32, #tpu.memory_space<vmem>>) attributes {dimension_semantics = [#tpu.dimension_semantics<parallel>], iteration_bounds = array<i64: 1>, scalar_prefetch = 0 : i64, scratch_operands = 0 : i64, tpu.core_type = #tpu.core_type<tc>, window_params = [{transform_indices = @transform_0, window_bounds = array<i64: 2>}, {transform_indices = @transform_1, window_bounds = array<i64: 32, 128>}, {transform_indices = @transform_2, window_bounds = array<i64: 32, 128>}, {transform_indices = @transform_3, window_bounds = array<i64: 32, 128>}, {transform_indices = @transform_4, window_bounds = array<i64: 32, 128>}, {transform_indices = @transform_5, window_bounds = array<i64: 32, 128>}, {transform_indices = @transform_6, window_bounds = array<i64: 32, 128>}, {transform_indices = @transform_7, window_bounds = array<i64: 32, 128>}]} {
    %c0 = arith.constant 0 : index
    %0 = memref.load %arg1[%c0] : memref<2xf32, #tpu.memory_space<smem>>
    %c1 = arith.constant 1 : index
    %1 = memref.load %arg1[%c1] : memref<2xf32, #tpu.memory_space<smem>>
    %c0_0 = arith.constant 0 : index
    %c0_1 = arith.constant 0 : index
    %2 = vector.load %arg3[%c0_0, %c0_1] : memref<32x128xf32, #tpu.memory_space<vmem>>, vector<32x128xf32>
    %c0_2 = arith.constant 0 : index
    %c0_3 = arith.constant 0 : index
    %3 = vector.load %arg4[%c0_2, %c0_3] : memref<32x128xf32, #tpu.memory_space<vmem>>, vector<32x128xf32>
    %cst = arith.constant 0.899999976 : f32
    %4 = vector.broadcast %cst : f32 to vector<32x128xf32>
    %5 = arith.mulf %4, %3 : vector<32x128xf32>
    %cst_4 = arith.constant 1.000000e-01 : f32
    %6 = vector.broadcast %cst_4 : f32 to vector<32x128xf32>
    %7 = arith.mulf %6, %2 : vector<32x128xf32>
    %8 = arith.addf %5, %7 : vector<32x128xf32>
    %c0_5 = arith.constant 0 : index
    %c0_6 = arith.constant 0 : index
    %9 = vector.load %arg5[%c0_5, %c0_6] : memref<32x128xf32, #tpu.memory_space<vmem>>, vector<32x128xf32>
    %cst_7 = arith.constant 9.990000e-01 : f32
    %10 = vector.broadcast %cst_7 : f32 to vector<32x128xf32>
    %11 = arith.mulf %10, %9 : vector<32x128xf32>
    %cst_8 = arith.constant 1.000000e-03 : f32
    %12 = vector.broadcast %cst_8 : f32 to vector<32x128xf32>
    %13 = arith.mulf %12, %2 : vector<32x128xf32>
    %14 = arith.mulf %13, %2 : vector<32x128xf32>
    %15 = arith.addf %11, %14 : vector<32x128xf32>
    %16 = vector.broadcast %0 : f32 to vector<32x128xf32>
    %17 = arith.mulf %8, %16 : vector<32x128xf32>
    %cst_9 = arith.constant 0.00999999977 : f32
    %18 = vector.broadcast %cst_9 : f32 to vector<32x128xf32>
    %19 = arith.mulf %18, %17 : vector<32x128xf32>
    %20 = vector.broadcast %1 : f32 to vector<32x128xf32>
    %21 = arith.mulf %15, %20 : vector<32x128xf32>
    %22 = math.sqrt %21 : vector<32x128xf32>
    %cst_10 = arith.constant 9.99999993E-9 : f32
    %23 = vector.broadcast %cst_10 : f32 to vector<32x128xf32>
    %24 = arith.addf %22, %23 : vector<32x128xf32>
    %25 = arith.divf %19, %24 : vector<32x128xf32>
    %c0_11 = arith.constant 0 : index
    %c0_12 = arith.constant 0 : index
    %26 = vector.load %arg2[%c0_11, %c0_12] : memref<32x128xf32, #tpu.memory_space<vmem>>, vector<32x128xf32>
    %27 = arith.subf %26, %25 : vector<32x128xf32>
    %cst_13 = arith.constant 0.000000e+00 : f32
    %cst_14 = arith.constant 1.000000e+00 : f32
    %28 = vector.broadcast %cst_13 : f32 to vector<32x128xf32>
    %29 = arith.maximumf %28, %27 : vector<32x128xf32>
    %30 = vector.broadcast %cst_14 : f32 to vector<32x128xf32>
    %31 = arith.minimumf %30, %29 : vector<32x128xf32>
    %c0_15 = arith.constant 0 : index
    %c0_16 = arith.constant 0 : index
    %32 = vector.load %arg6[%c0_15, %c0_16] : memref<32x128xf32, #tpu.memory_space<vmem>>, vector<32x128xf32>
    tpu.vector_store %arg6[%c0_15, %c0_16], %31 {strides = array<i32>} : memref<32x128xf32, #tpu.memory_space<vmem>>, vector<32x128xf32>,
    %c0_17 = arith.constant 0 : index
    %c0_18 = arith.constant 0 : index
    %33 = vector.load %arg7[%c0_17, %c0_18] : memref<32x128xf32, #tpu.memory_space<vmem>>, vector<32x128xf32>
    tpu.vector_store %arg7[%c0_17, %c0_18], %8 {strides = array<i32>} : memref<32x128xf32, #tpu.memory_space<vmem>>, vector<32x128xf32>,
    %c0_19 = arith.constant 0 : index
    %c0_20 = arith.constant 0 : index
    %34 = vector.load %arg8[%c0_19, %c0_20] : memref<32x128xf32, #tpu.memory_space<vmem>>, vector<32x128xf32>
    tpu.vector_store %arg8[%c0_19, %c0_20], %15 {strides = array<i32>} : memref<32x128xf32, #tpu.memory_space<vmem>>, vector<32x128xf32>,
    return
  }
  func.func @transform_0(%arg0: i32) -> i32 {
    %c0_i32 = arith.constant 0 : i32
    %c0_i32_0 = arith.constant 0 : i32
    return %c0_i32 : i32
  }
  func.func @transform_1(%arg0: i32) -> (i32, i32) {
    %c0_i32 = arith.constant 0 : i32
    %c0_i32_0 = arith.constant 0 : i32
    return %arg0, %c0_i32 : i32, i32
  }
  func.func @transform_2(%arg0: i32) -> (i32, i32) {
    %c0_i32 = arith.constant 0 : i32
    %c0_i32_0 = arith.constant 0 : i32
    return %arg0, %c0_i32 : i32, i32
  }
  func.func @transform_3(%arg0: i32) -> (i32, i32) {
    %c0_i32 = arith.constant 0 : i32
    %c0_i32_0 = arith.constant 0 : i32
    return %arg0, %c0_i32 : i32, i32
  }
  func.func @transform_4(%arg0: i32) -> (i32, i32) {
    %c0_i32 = arith.constant 0 : i32
    %c0_i32_0 = arith.constant 0 : i32
    return %arg0, %c0_i32 : i32, i32
  }
  func.func @transform_5(%arg0: i32) -> (i32, i32) {
    %c0_i32 = arith.constant 0 : i32
    %c0_i32_0 = arith.constant 0 : i32
    return %arg0, %c0_i32 : i32, i32
  }
  func.func @transform_6(%arg0: i32) -> (i32, i32) {
    %c0_i32 = arith.constant 0 : i32
    %c0_i32_0 = arith.constant 0 : i32
    return %arg0, %c0_i32 : i32, i32
  }
  func.func @transform_7(%arg0: i32) -> (i32, i32) {
    %c0_i32 = arith.constant 0 : i32
    %c0_i32_0 = arith.constant 0 : i32
    return %arg0, %c0_i32 : i32, i32
  }
}

</mosaic_0001>

<llo_original>
// kernel: jvp__.2
$region0: #{jvp__.2}
  #allocation0 [shape = 'u32[]', space=smem, size = 0x4, offset = 0x4, fixed_abs, tag = 'smem constant byte address 0x4 - core index']
  #allocation1 [shape = 'u32[72,128]{1,0:T(1,128)}', space=vmem, size = 0x9000, scoped, tag = 'internal scratch']
  #allocation2 [shape = 'f32[256,128]{1,0:T(8,128)}', space=vmem, size = 0x20000, scoped, tag = 'scratch operand']
  %s0 = inlined_call_operand.vmem [shape: bf16[512,512], index: 0, kind: input, shape index: {}]
  %s1 = inlined_call_operand.vmem [shape: f32[512,128], index: 1, kind: input, shape index: {}]
  %s2 = inlined_call_operand.vmem [shape: f32[1,128], index: 2, kind: input, shape index: {}]
  %s3 = inlined_call_operand.vmem [shape: f32[512,128], index: 3, kind: output, shape index: {}]
  %s4 = sld [smem:[#allocation0]]
  $region53: #{jvp__.2} parent=0
    _
  %s6 = ssub.s32 1, %s4
  %s7 = scalar_select 0, %s6, %s4
  loop: start=0, step=1, limit=4
  $region2: #{jvp__.2} parent=0 // loop_pre_header
    _
  $region3: #{jvp__.2} parent=0 // loop_header
    %s9 = sphi 0, %s13
    %p10 = scmp.ge.s32.totalorder %s9, 4
    %s16 = sphi 0, %s35
    %s17 = sphi 0, %s31
    %s18 = sphi 0, %s27
    %s19 = sphi 0, %s16
    %s20 = sphi 0, %s17
    %s21 = sphi 0, %s18
    %s22 = sphi 0, %s19
    %s23 = sphi 0, %s20
    %s24 = sphi 0, %s21
    %s40 = sphi 0, %s42
    %s43 = sphi 0, %s40
    %s44 = sphi 0, %s43
    %s60 = sphi 0, %s44
    %s68 = sphi 0, %s70
    %s71 = sphi 0, %s68
    %s72 = sphi 0, %s71
    %s88 = sphi 0, %s72
    %s94 = sphi 0, %s96
    %s97 = sphi 0, %s94
    %s98 = sphi 0, %s97
    %s114 = sphi 0, %s98
    %s122 = sphi 0, %s124
    %s125 = sphi 0, %s122
    %s126 = sphi 0, %s125
    %s142 = sphi 0, %s126
  $region4: #{jvp__.2} parent=0 // loop_header_branch
    %12 = sbr.rel (%p10) target = $region8
  $region5: #{jvp__.2} parent=0 // loop_body
    %s14 = ssub.s32 %s9, 1
    %s15 = ssub.s32 %s9, 2
    %s25 = sadd.s32 1, %s18
    %p26 = scmp.ge.s32.totalorder %s25, 1
    %s27 = scalar_select %p26, 0, %s25
    %s28 = sadd.s32 1, %s17
    %s29 = scalar_select %p26, %s28, %s17
    %p30 = scmp.ge.s32.totalorder %s29, 1
    %s31 = scalar_select %p30, 0, %s29
    %s32 = sadd.s32 1, %s16
    %s33 = scalar_select %p30, %s32, %s16
    %p34 = scmp.ge.s32.totalorder %s33, 2
    %s35 = scalar_select %p34, 0, %s33
    %s36 = ssub.s32 %s16, %s35
    %s37 = ssub.s32 %s18, %s27
    %s38 = sor.u32 %s36, %s37
    %p39 = scmp.eq.s32.totalorder %s38, 0
    %s41 = sadd.s32 %s40, 1
    %s42 = scalar_select %p39, %s40, %s41
    %p45 = pneg %p39
    %p46 = scmp.eq.s32.totalorder %s9, 1
    %p47 = por %p45, %p46
    %p48 = scmp.ne.s32.totalorder %s40, %s43
    %p49 = scmp.eq.s32.totalorder %s9, 0
    %p50 = por %p48, %p49
    %p51 = scmp.ne.s32.totalorder %s40, %s43
    %p52 = scmp.eq.s32.totalorder %s14, 1
    %p53 = por %p51, %p52
    %p54 = scmp.ne.s32.totalorder %s43, %s44
    %p55 = scmp.eq.s32.totalorder %s14, 0
    %p56 = por %p54, %p55
    %p57 = scmp.ne.s32.totalorder %s43, %s44
    %p58 = scmp.eq.s32.totalorder %s15, 1
    %p59 = por %p57, %p58
    %p61 = scmp.ne.s32.totalorder %s44, %s60
    %p62 = scmp.eq.s32.totalorder %s15, 0
    %p63 = por %p61, %p62
    %s64 = ssub.s32 %s18, %s27
    %s65 = ssub.s32 %s17, %s31
    %s66 = sor.u32 %s64, %s65
    %p67 = scmp.eq.s32.totalorder %s66, 0
    %s69 = sadd.s32 %s68, 1
    %s70 = scalar_select %p67, %s68, %s69
    %p73 = pneg %p67
    %p74 = scmp.eq.s32.totalorder %s9, 1
    %p75 = por %p73, %p74
    %p76 = scmp.ne.s32.totalorder %s68, %s71
    %p77 = scmp.eq.s32.totalorder %s9, 0
    %p78 = por %p76, %p77
    %p79 = scmp.ne.s32.totalorder %s68, %s71
    %p80 = scmp.eq.s32.totalorder %s14, 1
    %p81 = por %p79, %p80
    %p82 = scmp.ne.s32.totalorder %s71, %s72
    %p83 = scmp.eq.s32.totalorder %s14, 0
    %p84 = por %p82, %p83
    %p85 = scmp.ne.s32.totalorder %s71, %s72
    %p86 = scmp.eq.s32.totalorder %s15, 1
    %p87 = por %p85, %p86
    %p89 = scmp.ne.s32.totalorder %s72, %s88
    %p90 = scmp.eq.s32.totalorder %s15, 0
    %p91 = por %p89, %p90
    %s92 = ssub.s32 %s17, %s31
    %p93 = scmp.eq.s32.totalorder %s92, 0
    %s95 = sadd.s32 %s94, 1
    %s96 = scalar_select %p93, %s94, %s95
    %p99 = pneg %p93
    %p100 = scmp.eq.s32.totalorder %s9, 1
    %p101 = por %p99, %p100
    %p102 = scmp.ne.s32.totalorder %s94, %s97
    %p103 = scmp.eq.s32.totalorder %s9, 0
    %p104 = por %p102, %p103
    %p105 = scmp.ne.s32.totalorder %s94, %s97
    %p106 = scmp.eq.s32.totalorder %s14, 1
    %p107 = por %p105, %p106
    %p108 = scmp.ne.s32.totalorder %s97, %s98
    %p109 = scmp.eq.s32.totalorder %s14, 0
    %p110 = por %p108, %p109
    %p111 = scmp.ne.s32.totalorder %s97, %s98
    %p112 = scmp.eq.s32.totalorder %s15, 1
    %p113 = por %p111, %p112
    %p115 = scmp.ne.s32.totalorder %s98, %s114
    %p116 = scmp.eq.s32.totalorder %s15, 0
    %p117 = por %p115, %p116
    %s118 = ssub.s32 %s16, %s35
    %s119 = ssub.s32 %s17, %s31
    %s120 = sor.u32 %s118, %s119
    %p121 = scmp.eq.s32.totalorder %s120, 0
    %s123 = sadd.s32 %s122, 1
    %s124 = scalar_select %p121, %s122, %s123
    %p127 = pneg %p121
    %p128 = scmp.eq.s32.totalorder %s9, 1
    %p129 = por %p127, %p128
    %p130 = scmp.ne.s32.totalorder %s122, %s125
    %p131 = scmp.eq.s32.totalorder %s9, 0
    %p132 = por %p130, %p131
    %p133 = scmp.ne.s32.totalorder %s122, %s125
    %p134 = scmp.eq.s32.totalorder %s14, 1
    %p135 = por %p133, %p134
    %p136 = scmp.ne.s32.totalorder %s125, %s126
    %p137 = scmp.eq.s32.totalorder %s14, 0
    %p138 = por %p136, %p137
    %p139 = scmp.ne.s32.totalorder %s125, %s126
    %p140 = scmp.eq.s32.totalorder %s15, 1
    %p141 = por %p139, %p140
    %p143 = scmp.ne.s32.totalorder %s126, %s142
    %p144 = scmp.eq.s32.totalorder %s15, 0
    %p145 = por %p143, %p144
    %p146 = scmp.le.s32.totalorder 1, %s9
    %p147 = scmp.lt.s32.totalorder %s9, 3
    %p148 = pnand %p146, %p147
    %p149 = pneg %p148
    // Predicated region
    $region9: #{jvp__.2} parent=5 // pred_check
      _
    $region10: #{jvp__.2} parent=5 // pred_check_branch
      %151 = sbr.rel (%p148) target = $region12
    $region11: #{jvp__.2} parent=5 // pred_region
      %s152 = ssub.s32 %s9, 1
      // Predicated region
      $region13: #{jvp__.2} parent=11 // pred_check
        %p153 = pneg %p84
      $region14: #{jvp__.2} parent=11 // pred_check_branch
        %155 = sbr.rel (%p153) target = $region16
      $region15: #{jvp__.2} parent=11 // pred_region
        %s156 = smul.u32 64, %s21
        %p157 = scmp.lt.s32.totalorder %s156, 63
        %s158 = scalar_select %p157, %s156, 63
        %p159 = scmp.lt.s32.totalorder %s20, 0
        %s160 = scalar_select %p159, %s20, 0
        %s161 = sadd.s32 %s160, %s158
        %s162 = smul.addr %s161, 8
        %s163 = scalar_lea.vmem %s1, %s162
        %s164 = smul.u32 64, %s21
      $region16: #{jvp__.2} parent=11 // pred_fallthru
        _
      // Predicated region
      $region17: #{jvp__.2} parent=11 // pred_check
        %p165 = pneg %p110
      $region18: #{jvp__.2} parent=11 // pred_check_branch
        %167 = sbr.rel (%p165) target = $region20
      $region19: #{jvp__.2} parent=11 // pred_region
        %p168 = scmp.lt.s32.totalorder %s20, 0
        %s169 = scalar_select %p168, %s20, 0
        %s170 = scalar_lea.vmem %s2, %s169
      $region20: #{jvp__.2} parent=11 // pred_fallthru
        _
    $region12: #{jvp__.2} parent=5 // pred_fallthru
      _
    %p171 = scmp.lt.s32.totalorder %s9, 2
    // Predicated region
    $region21: #{jvp__.2} parent=5 // pred_check
      %p172 = pneg %p171
    $region22: #{jvp__.2} parent=5 // pred_check_branch
      %174 = sbr.rel (%p172) target = $region24
    $region23: #{jvp__.2} parent=5 // pred_region
      // Predicated region
      $region25: #{jvp__.2} parent=23 // pred_check
        %p175 = pneg %p50
      $region26: #{jvp__.2} parent=23 // pred_check_branch
        %177 = sbr.rel (%p175) target = $region28
      $region27: #{jvp__.2} parent=23 // pred_region
        %s178 = smul.u32 32, %s16
        %s179 = smul.u32 4, %s18
        %p180 = scmp.lt.s32.totalorder %s178, 63
        %s181 = scalar_select %p180, %s178, 63
        %p182 = scmp.lt.s32.totalorder %s179, 3
        %s183 = scalar_select %p182, %s179, 3
        %s184 = smul.addr %s181, 4
        %s185 = sadd.s32 %s183, %s184
        %s186 = smul.addr %s185, 4
        %s187 = scalar_lea.vmem %s0, %s186
        %s188 = smul.u32 32, %s16
        %s189 = smul.u32 4, %s18
      $region28: #{jvp__.2} parent=23 // pred_fallthru
        _
    $region24: #{jvp__.2} parent=5 // pred_fallthru
      _
    %p190 = scmp.le.s32.totalorder 1, %s9
    %p191 = scmp.lt.s32.totalorder %s9, 3
    %p192 = pnand %p190, %p191
    %p193 = pneg %p192
    // Predicated region
    $region29: #{jvp__.2} parent=5 // pred_check
      _
    $region30: #{jvp__.2} parent=5 // pred_check_branch
      %195 = sbr.rel (%p192) target = $region32
    $region31: #{jvp__.2} parent=5 // pred_region
      %s196 = ssub.s32 %s9, 1
      %s197 = smul.u32 32, %s19
      %s198 = smul.u32 4, %s21
      %p199 = scmp.lt.s32.totalorder %s197, 63
      %s200 = scalar_select %p199, %s197, 63
      %p201 = scmp.lt.s32.totalorder %s198, 3
      %s202 = scalar_select %p201, %s198, 3
      %s203 = smul.addr %s200, 4
      %s204 = sadd.s32 %s202, %s203
      %s205 = smul.addr %s204, 4
      %s206 = scalar_lea.vmem %s0, %s205
      %p207 = pneg %p56
      %p208 = pneg %p53
      %s209 = smul.u32 64, %s21
      %p210 = scmp.lt.s32.totalorder %s209, 63
      %s211 = scalar_select %p210, %s209, 63
      %p212 = scmp.lt.s32.totalorder %s20, 0
      %s213 = scalar_select %p212, %s20, 0
      %s214 = sadd.s32 %s213, %s211
      %s215 = smul.addr %s214, 8
      %s216 = scalar_lea.vmem %s1, %s215
      %p217 = pneg %p84
      %p218 = pneg %p81
      %p219 = scmp.lt.s32.totalorder %s20, 0
      %s220 = scalar_select %p219, %s20, 0
      %s221 = scalar_lea.vmem %s2, %s220
      %p222 = pneg %p110
      %p223 = pneg %p107
      %p224 = pneg %p138
      %p225 = pneg %p135
      %s226 = smul.u32 32, %s19
      %p227 = scmp.lt.s32.totalorder %s226, 63
      %s228 = scalar_select %p227, %s226, 63
      %p229 = scmp.lt.s32.totalorder %s20, 0
      %s230 = scalar_select %p229, %s20, 0
      %s231 = sadd.s32 %s230, %s228
      %s232 = smul.addr %s231, 8
      %s233 = scalar_lea.vmem %s3, %s232
      %s234 = smul.u32 32, %s19
      %s235 = smul.u32 4, %s21
      %p236 = scmp.lt.s32.totalorder %s234, 63
      %s237 = scalar_select %p236, %s234, 63
      %p238 = scmp.lt.s32.totalorder %s235, 3
      %s239 = scalar_select %p238, %s235, 3
      %s240 = smul.addr %s237, 4
      %s241 = sadd.s32 %s239, %s240
      %s242 = smul.addr %s241, 4
      %s243 = scalar_lea.vmem %s0, %s242
      %s244 = smul.u32 32, %s19
      %s245 = smul.u32 4, %s21
      %s246 = smul.u32 64, %s21
      %p247 = scmp.lt.s32.totalorder %s246, 63
      %s248 = scalar_select %p247, %s246, 63
      %p249 = scmp.lt.s32.totalorder %s20, 0
      %s250 = scalar_select %p249, %s20, 0
      %s251 = sadd.s32 %s250, %s248
      %s252 = smul.addr %s251, 8
      %s253 = scalar_lea.vmem %s1, %s252
      %s254 = smul.u32 64, %s21
      %p255 = scmp.lt.s32.totalorder %s20, 0
      %s256 = scalar_select %p255, %s20, 0
      %s257 = scalar_lea.vmem %s2, %s256
      %s258 = smul.u32 32, %s19
      %p259 = scmp.lt.s32.totalorder %s258, 63
      %s260 = scalar_select %p259, %s258, 63
      %p261 = scmp.lt.s32.totalorder %s20, 0
      %s262 = scalar_select %p261, %s20, 0
      %s263 = sadd.s32 %s262, %s260
      %s264 = smul.addr %s263, 8
      %s265 = scalar_lea.vmem %s3, %s264
      %s266 = smul.u32 32, %s19
      %p267 = scmp.eq.s32.totalorder %s21, 0
      // Predicated region
      $region33: #{jvp__.2} parent=31 // pred_check
        %p268 = pneg %p267
      $region34: #{jvp__.2} parent=31 // pred_check_branch
        %270 = sbr.rel (%p268) target = $region36
      $region35: #{jvp__.2} parent=31 // pred_region
        %271 = vst [vmem:[#allocation2] sm:$0xff] 0.0
        %272 = vst [vmem:[#allocation2 + $0x8] sm:$0xff] 0.0
        %273 = vst [vmem:[#allocation2 + $0x10] sm:$0xff] 0.0
        %274 = vst [vmem:[#allocation2 + $0x18] sm:$0xff] 0.0
        %275 = vst [vmem:[#allocation2 + $0x20] sm:$0xff] 0.0
        %276 = vst [vmem:[#allocation2 + $0x28] sm:$0xff] 0.0
        %277 = vst [vmem:[#allocation2 + $0x30] sm:$0xff] 0.0
        %278 = vst [vmem:[#allocation2 + $0x38] sm:$0xff] 0.0
        %279 = vst [vmem:[#allocation2 + $0x40] sm:$0xff] 0.0
        %280 = vst [vmem:[#allocation2 + $0x48] sm:$0xff] 0.0
        %281 = vst [vmem:[#allocation2 + $0x50] sm:$0xff] 0.0
        %282 = vst [vmem:[#allocation2 + $0x58] sm:$0xff] 0.0
        %283 = vst [vmem:[#allocation2 + $0x60] sm:$0xff] 0.0
        %284 = vst [vmem:[#allocation2 + $0x68] sm:$0xff] 0.0
        %285 = vst [vmem:[#allocation2 + $0x70] sm:$0xff] 0.0
        %286 = vst [vmem:[#allocation2 + $0x78] sm:$0xff] 0.0
        %287 = vst [vmem:[#allocation2 + $0x80] sm:$0xff] 0.0
        %288 = vst [vmem:[#allocation2 + $0x88] sm:$0xff] 0.0
        %289 = vst [vmem:[#allocation2 + $0x90] sm:$0xff] 0.0
        %290 = vst [vmem:[#allocation2 + $0x98] sm:$0xff] 0.0
        %291 = vst [vmem:[#allocation2 + $0xa0] sm:$0xff] 0.0
        %292 = vst [vmem:[#allocation2 + $0xa8] sm:$0xff] 0.0
        %293 = vst [vmem:[#allocation2 + $0xb0] sm:$0xff] 0.0
        %294 = vst [vmem:[#allocation2 + $0xb8] sm:$0xff] 0.0
        %295 = vst [vmem:[#allocation2 + $0xc0] sm:$0xff] 0.0
        %296 = vst [vmem:[#allocation2 + $0xc8] sm:$0xff] 0.0
        %297 = vst [vmem:[#allocation2 + $0xd0] sm:$0xff] 0.0
        %298 = vst [vmem:[#allocation2 + $0xd8] sm:$0xff] 0.0
        %299 = vst [vmem:[#allocation2 + $0xe0] sm:$0xff] 0.0
        %300 = vst [vmem:[#allocation2 + $0xe8] sm:$0xff] 0.0
        %301 = vst [vmem:[#allocation2 + $0xf0] sm:$0xff] 0.0
        %302 = vst [vmem:[#allocation2 + $0xf8] sm:$0xff] 0.0
      $region36: #{jvp__.2} parent=31 // pred_fallthru
        _
      %v303 = vld [vmem:[%s243] sm:$0xff]
      %v304 = vld [vmem:[%s243 + $0x8] sm:$0xff]
      %v305 = vld [vmem:[%s243 + $0x10] sm:$0xff]
      %v306 = vld [vmem:[%s243 + $0x18] sm:$0xff]
      %v307 = vld [vmem:[%s243 + $0x20] sm:$0xff]
      %v308 = vld [vmem:[%s243 + $0x28] sm:$0xff]
      %v309 = vld [vmem:[%s243 + $0x30] sm:$0xff]
      %v310 = vld [vmem:[%s243 + $0x38] sm:$0xff]
      %v311 = vld [vmem:[%s243 + $0x40] sm:$0xff]
      %v312 = vld [vmem:[%s243 + $0x48] sm:$0xff]
      %v313 = vld [vmem:[%s243 + $0x50] sm:$0xff]
      %v314 = vld [vmem:[%s243 + $0x58] sm:$0xff]
      %v315 = vld [vmem:[%s243 + $0x60] sm:$0xff]
      %v316 = vld [vmem:[%s243 + $0x68] sm:$0xff]
      %v317 = vld [vmem:[%s243 + $0x70] sm:$0xff]
      %v318 = vld [vmem:[%s243 + $0x78] sm:$0xff]
      %v319 = vld [vmem:[%s243 + $0x80] sm:$0xff]
      %v320 = vld [vmem:[%s243 + $0x88] sm:$0xff]
      %v321 = vld [vmem:[%s243 + $0x90] sm:$0xff]
      %v322 = vld [vmem:[%s243 + $0x98] sm:$0xff]
      %v323 = vld [vmem:[%s243 + $0xa0] sm:$0xff]
      %v324 = vld [vmem:[%s243 + $0xa8] sm:$0xff]
      %v325 = vld [vmem:[%s243 + $0xb0] sm:$0xff]
      %v326 = vld [vmem:[%s243 + $0xb8] sm:$0xff]
      %v327 = vld [vmem:[%s243 + $0xc0] sm:$0xff]
      %v328 = vld [vmem:[%s243 + $0xc8] sm:$0xff]
      %v329 = vld [vmem:[%s243 + $0xd0] sm:$0xff]
      %v330 = vld [vmem:[%s243 + $0xd8] sm:$0xff]
      %v331 = vld [vmem:[%s243 + $0xe0] sm:$0xff]
      %v332 = vld [vmem:[%s243 + $0xe8] sm:$0xff]
      %v333 = vld [vmem:[%s243 + $0xf0] sm:$0xff]
      %v334 = vld [vmem:[%s243 + $0xf8] sm:$0xff]
      %v335 = vld [vmem:[%s243 + $0x100] sm:$0xff]
      %v336 = vld [vmem:[%s243 + $0x108] sm:$0xff]
      %v337 = vld [vmem:[%s243 + $0x110] sm:$0xff]
      %v338 = vld [vmem:[%s243 + $0x118] sm:$0xff]
      %v339 = vld [vmem:[%s243 + $0x120] sm:$0xff]
      %v340 = vld [vmem:[%s243 + $0x128] sm:$0xff]
      %v341 = vld [vmem:[%s243 + $0x130] sm:$0xff]
      %v342 = vld [vmem:[%s243 + $0x138] sm:$0xff]
      %v343 = vld [vmem:[%s243 + $0x140] sm:$0xff]
      %v344 = vld [vmem:[%s243 + $0x148] sm:$0xff]
      %v345 = vld [vmem:[%s243 + $0x150] sm:$0xff]
      %v346 = vld [vmem:[%s243 + $0x158] sm:$0xff]
      %v347 = vld [vmem:[%s243 + $0x160] sm:$0xff]
      %v348 = vld [vmem:[%s243 + $0x168] sm:$0xff]
      %v349 = vld [vmem:[%s243 + $0x170] sm:$0xff]
      %v350 = vld [vmem:[%s243 + $0x178] sm:$0xff]
      %v351 = vld [vmem:[%s243 + $0x180] sm:$0xff]
      %v352 = vld [vmem:[%s243 + $0x188] sm:$0xff]
      %v353 = vld [vmem:[%s243 + $0x190] sm:$0xff]
      %v354 = vld [vmem:[%s243 + $0x198] sm:$0xff]
      %v355 = vld [vmem:[%s243 + $0x1a0] sm:$0xff]
      %v356 = vld [vmem:[%s243 + $0x1a8] sm:$0xff]
      %v357 = vld [vmem:[%s243 + $0x1b0] sm:$0xff]
      %v358 = vld [vmem:[%s243 + $0x1b8] sm:$0xff]
      %v359 = vld [vmem:[%s243 + $0x1c0] sm:$0xff]
      %v360 = vld [vmem:[%s243 + $0x1c8] sm:$0xff]
      %v361 = vld [vmem:[%s243 + $0x1d0] sm:$0xff]
      %v362 = vld [vmem:[%s243 + $0x1d8] sm:$0xff]
      %v363 = vld [vmem:[%s243 + $0x1e0] sm:$0xff]
      %v364 = vld [vmem:[%s243 + $0x1e8] sm:$0xff]
      %v365 = vld [vmem:[%s243 + $0x1f0] sm:$0xff]
      %v366 = vld [vmem:[%s243 + $0x1f8] sm:$0xff]
      %v367 = vld [vmem:[%s253] sm:$0xff]
      %v368 = vld [vmem:[%s253 + $0x8] sm:$0xff]
      %v369 = vld [vmem:[%s253 + $0x10] sm:$0xff]
      %v370 = vld [vmem:[%s253 + $0x18] sm:$0xff]
      %v371 = vld [vmem:[%s253 + $0x20] sm:$0xff]
      %v372 = vld [vmem:[%s253 + $0x28] sm:$0xff]
      %v373 = vld [vmem:[%s253 + $0x30] sm:$0xff]
      %v374 = vld [vmem:[%s253 + $0x38] sm:$0xff]
      %v375 = vld [vmem:[%s253 + $0x40] sm:$0xff]
      %v376 = vld [vmem:[%s253 + $0x48] sm:$0xff]
      %v377 = vld [vmem:[%s253 + $0x50] sm:$0xff]
      %v378 = vld [vmem:[%s253 + $0x58] sm:$0xff]
      %v379 = vld [vmem:[%s253 + $0x60] sm:$0xff]
      %v380 = vld [vmem:[%s253 + $0x68] sm:$0xff]
      %v381 = vld [vmem:[%s253 + $0x70] sm:$0xff]
      %v382 = vld [vmem:[%s253 + $0x78] sm:$0xff]
      %v383 = vld [vmem:[%s253 + $0x80] sm:$0xff]
      %v384 = vld [vmem:[%s253 + $0x88] sm:$0xff]
      %v385 = vld [vmem:[%s253 + $0x90] sm:$0xff]
      %v386 = vld [vmem:[%s253 + $0x98] sm:$0xff]
      %v387 = vld [vmem:[%s253 + $0xa0] sm:$0xff]
      %v388 = vld [vmem:[%s253 + $0xa8] sm:$0xff]
      %v389 = vld [vmem:[%s253 + $0xb0] sm:$0xff]
      %v390 = vld [vmem:[%s253 + $0xb8] sm:$0xff]
      %v391 = vld [vmem:[%s253 + $0xc0] sm:$0xff]
      %v392 = vld [vmem:[%s253 + $0xc8] sm:$0xff]
      %v393 = vld [vmem:[%s253 + $0xd0] sm:$0xff]
      %v394 = vld [vmem:[%s253 + $0xd8] sm:$0xff]
      %v395 = vld [vmem:[%s253 + $0xe0] sm:$0xff]
      %v396 = vld [vmem:[%s253 + $0xe8] sm:$0xff]
      %v397 = vld [vmem:[%s253 + $0xf0] sm:$0xff]
      %v398 = vld [vmem:[%s253 + $0xf8] sm:$0xff]
      %v399 = vld [vmem:[%s253 + $0x100] sm:$0xff]
      %v400 = vld [vmem:[%s253 + $0x108] sm:$0xff]
      %v401 = vld [vmem:[%s253 + $0x110] sm:$0xff]
      %v402 = vld [vmem:[%s253 + $0x118] sm:$0xff]
      %v403 = vld [vmem:[%s253 + $0x120] sm:$0xff]
      %v404 = vld [vmem:[%s253 + $0x128] sm:$0xff]
      %v405 = vld [vmem:[%s253 + $0x130] sm:$0xff]
      %v406 = vld [vmem:[%s253 + $0x138] sm:$0xff]
      %v407 = vld [vmem:[%s253 + $0x140] sm:$0xff]
      %v408 = vld [vmem:[%s253 + $0x148] sm:$0xff]
      %v409 = vld [vmem:[%s253 + $0x150] sm:$0xff]
      %v410 = vld [vmem:[%s253 + $0x158] sm:$0xff]
      %v411 = vld [vmem:[%s253 + $0x160] sm:$0xff]
      %v412 = vld [vmem:[%s253 + $0x168] sm:$0xff]
      %v413 = vld [vmem:[%s253 + $0x170] sm:$0xff]
      %v414 = vld [vmem:[%s253 + $0x178] sm:$0xff]
      %v415 = vld [vmem:[%s253 + $0x180] sm:$0xff]
      %v416 = vld [vmem:[%s253 + $0x188] sm:$0xff]
      %v417 = vld [vmem:[%s253 + $0x190] sm:$0xff]
      %v418 = vld [vmem:[%s253 + $0x198] sm:$0xff]
      %v419 = vld [vmem:[%s253 + $0x1a0] sm:$0xff]
      %v420 = vld [vmem:[%s253 + $0x1a8] sm:$0xff]
      %v421 = vld [vmem:[%s253 + $0x1b0] sm:$0xff]
      %v422 = vld [vmem:[%s253 + $0x1b8] sm:$0xff]
      %v423 = vld [vmem:[%s253 + $0x1c0] sm:$0xff]
      %v424 = vld [vmem:[%s253 + $0x1c8] sm:$0xff]
      %v425 = vld [vmem:[%s253 + $0x1d0] sm:$0xff]
      %v426 = vld [vmem:[%s253 + $0x1d8] sm:$0xff]
      %v427 = vld [vmem:[%s253 + $0x1e0] sm:$0xff]
      %v428 = vld [vmem:[%s253 + $0x1e8] sm:$0xff]
      %v429 = vld [vmem:[%s253 + $0x1f0] sm:$0xff]
      %v430 = vld [vmem:[%s253 + $0x1f8] sm:$0xff]
      %v431 = vpack.c.bf16 %v368, %v367
      %v432 = vpack.c.bf16 %v370, %v369
      %v433 = vpack.c.bf16 %v372, %v371
      %v434 = vpack.c.bf16 %v374, %v373
      %v435 = vpack.c.bf16 %v376, %v375
      %v436 = vpack.c.bf16 %v378, %v377
      %v437 = vpack.c.bf16 %v380, %v379
      %v438 = vpack.c.bf16 %v382, %v381
      %v439 = vpack.c.bf16 %v384, %v383
      %v440 = vpack.c.bf16 %v386, %v385
      %v441 = vpack.c.bf16 %v388, %v387
      %v442 = vpack.c.bf16 %v390, %v389
      %v443 = vpack.c.bf16 %v392, %v391
      %v444 = vpack.c.bf16 %v394, %v393
      %v445 = vpack.c.bf16 %v396, %v395
      %v446 = vpack.c.bf16 %v398, %v397
      %v447 = vpack.c.bf16 %v400, %v399
      %v448 = vpack.c.bf16 %v402, %v401
      %v449 = vpack.c.bf16 %v404, %v403
      %v450 = vpack.c.bf16 %v406, %v405
      %v451 = vpack.c.bf16 %v408, %v407
      %v452 = vpack.c.bf16 %v410, %v409
      %v453 = vpack.c.bf16 %v412, %v411
      %v454 = vpack.c.bf16 %v414, %v413
      %v455 = vpack.c.bf16 %v416, %v415
      %v456 = vpack.c.bf16 %v418, %v417
      %v457 = vpack.c.bf16 %v420, %v419
      %v458 = vpack.c.bf16 %v422, %v421
      %v459 = vpack.c.bf16 %v424, %v423
      %v460 = vpack.c.bf16 %v426, %v425
      %v461 = vpack.c.bf16 %v428, %v427
      %v462 = vpack.c.bf16 %v430, %v429
      %v463 = vld [vmem:[#allocation2] sm:$0xff]
      %v464 = vld [vmem:[#allocation2 + $0x8] sm:$0xff]
      %v465 = vld [vmem:[#allocation2 + $0x10] sm:$0xff]
      %v466 = vld [vmem:[#allocation2 + $0x18] sm:$0xff]
      %v467 = vld [vmem:[#allocation2 + $0x20] sm:$0xff]
      %v468 = vld [vmem:[#allocation2 + $0x28] sm:$0xff]
      %v469 = vld [vmem:[#allocation2 + $0x30] sm:$0xff]
      %v470 = vld [vmem:[#allocation2 + $0x38] sm:$0xff]
      %v471 = vld [vmem:[#allocation2 + $0x40] sm:$0xff]
      %v472 = vld [vmem:[#allocation2 + $0x48] sm:$0xff]
      %v473 = vld [vmem:[#allocation2 + $0x50] sm:$0xff]
      %v474 = vld [vmem:[#allocation2 + $0x58] sm:$0xff]
      %v475 = vld [vmem:[#allocation2 + $0x60] sm:$0xff]
      %v476 = vld [vmem:[#allocation2 + $0x68] sm:$0xff]
      %v477 = vld [vmem:[#allocation2 + $0x70] sm:$0xff]
      %v478 = vld [vmem:[#allocation2 + $0x78] sm:$0xff]
      %v479 = vld [vmem:[#allocation2 + $0x80] sm:$0xff]
      %v480 = vld [vmem:[#allocation2 + $0x88] sm:$0xff]
      %v481 = vld [vmem:[#allocation2 + $0x90] sm:$0xff]
      %v482 = vld [vmem:[#allocation2 + $0x98] sm:$0xff]
      %v483 = vld [vmem:[#allocation2 + $0xa0] sm:$0xff]
      %v484 = vld [vmem:[#allocation2 + $0xa8] sm:$0xff]
      %v485 = vld [vmem:[#allocation2 + $0xb0] sm:$0xff]
      %v486 = vld [vmem:[#allocation2 + $0xb8] sm:$0xff]
      %v487 = vld [vmem:[#allocation2 + $0xc0] sm:$0xff]
      %v488 = vld [vmem:[#allocation2 + $0xc8] sm:$0xff]
      %v489 = vld [vmem:[#allocation2 + $0xd0] sm:$0xff]
      %v490 = vld [vmem:[#allocation2 + $0xd8] sm:$0xff]
      %v491 = vld [vmem:[#allocation2 + $0xe0] sm:$0xff]
      %v492 = vld [vmem:[#allocation2 + $0xe8] sm:$0xff]
      %v493 = vld [vmem:[#allocation2 + $0xf0] sm:$0xff]
      %v494 = vld [vmem:[#allocation2 + $0xf8] sm:$0xff]
      %v559 = vunpack.c.l.b16 %v303
      %v560 = vunpack.c.h.b16 %v303
      %v561 = vunpack.c.l.b16 %v304
      %v562 = vunpack.c.h.b16 %v304
      %v563 = vunpack.c.l.b16 %v305
      %v564 = vunpack.c.h.b16 %v305
      %v565 = vunpack.c.l.b16 %v306
      %v566 = vunpack.c.h.b16 %v306
      %v567 = vunpack.c.l.b16 %v307
      %v568 = vunpack.c.h.b16 %v307
      %v569 = vunpack.c.l.b16 %v308
      %v570 = vunpack.c.h.b16 %v308
      %v571 = vunpack.c.l.b16 %v309
      %v572 = vunpack.c.h.b16 %v309
      %v573 = vunpack.c.l.b16 %v310
      %v574 = vunpack.c.h.b16 %v310
      %v575 = vunpack.c.l.b16 %v311
      %v576 = vunpack.c.h.b16 %v311
      %v577 = vunpack.c.l.b16 %v312
      %v578 = vunpack.c.h.b16 %v312
      %v579 = vunpack.c.l.b16 %v313
      %v580 = vunpack.c.h.b16 %v313
      %v581 = vunpack.c.l.b16 %v314
      %v582 = vunpack.c.h.b16 %v314
      %v583 = vunpack.c.l.b16 %v315
      %v584 = vunpack.c.h.b16 %v315
      %v585 = vunpack.c.l.b16 %v316
      %v586 = vunpack.c.h.b16 %v316
      %v587 = vunpack.c.l.b16 %v317
      %v588 = vunpack.c.h.b16 %v317
      %v589 = vunpack.c.l.b16 %v318
      %v590 = vunpack.c.h.b16 %v318
      %v591 = vunpack.c.l.b16 %v319
      %v592 = vunpack.c.h.b16 %v319
      %v593 = vunpack.c.l.b16 %v320
      %v594 = vunpack.c.h.b16 %v320
      %v595 = vunpack.c.l.b16 %v321
      %v596 = vunpack.c.h.b16 %v321
      %v597 = vunpack.c.l.b16 %v322
      %v598 = vunpack.c.h.b16 %v322
      %v599 = vunpack.c.l.b16 %v323
      %v600 = vunpack.c.h.b16 %v323
      %v601 = vunpack.c.l.b16 %v324
      %v602 = vunpack.c.h.b16 %v324
      %v603 = vunpack.c.l.b16 %v325
      %v604 = vunpack.c.h.b16 %v325
      %v605 = vunpack.c.l.b16 %v326
      %v606 = vunpack.c.h.b16 %v326
      %v607 = vunpack.c.l.b16 %v327
      %v608 = vunpack.c.h.b16 %v327
      %v609 = vunpack.c.l.b16 %v328
      %v610 = vunpack.c.h.b16 %v328
      %v611 = vunpack.c.l.b16 %v329
      %v612 = vunpack.c.h.b16 %v329
      %v613 = vunpack.c.l.b16 %v330
      %v614 = vunpack.c.h.b16 %v330
      %v615 = vunpack.c.l.b16 %v331
      %v616 = vunpack.c.h.b16 %v331
      %v617 = vunpack.c.l.b16 %v332
      %v618 = vunpack.c.h.b16 %v332
      %v619 = vunpack.c.l.b16 %v333
      %v620 = vunpack.c.h.b16 %v333
      %v621 = vunpack.c.l.b16 %v334
      %v622 = vunpack.c.h.b16 %v334
      %v623 = vunpack.c.l.b16 %v335
      %v624 = vunpack.c.h.b16 %v335
      %v625 = vunpack.c.l.b16 %v336
      %v626 = vunpack.c.h.b16 %v336
      %v627 = vunpack.c.l.b16 %v337
      %v628 = vunpack.c.h.b16 %v337
      %v629 = vunpack.c.l.b16 %v338
      %v630 = vunpack.c.h.b16 %v338
      %v631 = vunpack.c.l.b16 %v339
      %v632 = vunpack.c.h.b16 %v339
      %v633 = vunpack.c.l.b16 %v340
      %v634 = vunpack.c.h.b16 %v340
      %v635 = vunpack.c.l.b16 %v341
      %v636 = vunpack.c.h.b16 %v341
      %v637 = vunpack.c.l.b16 %v342
      %v638 = vunpack.c.h.b16 %v342
      %v639 = vunpack.c.l.b16 %v343
      %v640 = vunpack.c.h.b16 %v343
      %v641 = vunpack.c.l.b16 %v344
      %v642 = vunpack.c.h.b16 %v344
      %v643 = vunpack.c.l.b16 %v345
      %v644 = vunpack.c.h.b16 %v345
      %v645 = vunpack.c.l.b16 %v346
      %v646 = vunpack.c.h.b16 %v346
      %v647 = vunpack.c.l.b16 %v347
      %v648 = vunpack.c.h.b16 %v347
      %v649 = vunpack.c.l.b16 %v348
      %v650 = vunpack.c.h.b16 %v348
      %v651 = vunpack.c.l.b16 %v349
      %v652 = vunpack.c.h.b16 %v349
      %v653 = vunpack.c.l.b16 %v350
      %v654 = vunpack.c.h.b16 %v350
      %v655 = vunpack.c.l.b16 %v351
      %v656 = vunpack.c.h.b16 %v351
      %v657 = vunpack.c.l.b16 %v352
      %v658 = vunpack.c.h.b16 %v352
      %v659 = vunpack.c.l.b16 %v353
      %v660 = vunpack.c.h.b16 %v353
      %v661 = vunpack.c.l.b16 %v354
      %v662 = vunpack.c.h.b16 %v354
      %v663 = vunpack.c.l.b16 %v355
      %v664 = vunpack.c.h.b16 %v355
      %v665 = vunpack.c.l.b16 %v356
      %v666 = vunpack.c.h.b16 %v356
      %v667 = vunpack.c.l.b16 %v357
      %v668 = vunpack.c.h.b16 %v357
      %v669 = vunpack.c.l.b16 %v358
      %v670 = vunpack.c.h.b16 %v358
      %v671 = vunpack.c.l.b16 %v359
      %v672 = vunpack.c.h.b16 %v359
      %v673 = vunpack.c.l.b16 %v360
      %v674 = vunpack.c.h.b16 %v360
      %v675 = vunpack.c.l.b16 %v361
      %v676 = vunpack.c.h.b16 %v361
      %v677 = vunpack.c.l.b16 %v362
      %v678 = vunpack.c.h.b16 %v362
      %v679 = vunpack.c.l.b16 %v363
      %v680 = vunpack.c.h.b16 %v363
      %v681 = vunpack.c.l.b16 %v364
      %v682 = vunpack.c.h.b16 %v364
      %v683 = vunpack.c.l.b16 %v365
      %v684 = vunpack.c.h.b16 %v365
      %v685 = vunpack.c.l.b16 %v366
      %v686 = vunpack.c.h.b16 %v366
      %v687 = vpack.c.b16 %v563, %v559
      %v688 = vpack.c.b16 %v564, %v560
      %v689 = vpack.c.b16 %v565, %v561
      %v690 = vpack.c.b16 %v566, %v562
      %v691 = vpack.c.b16 %v571, %v567
      %v692 = vpack.c.b16 %v572, %v568
      %v693 = vpack.c.b16 %v573, %v569
      %v694 = vpack.c.b16 %v574, %v570
      %v695 = vpack.c.b16 %v579, %v575
      %v696 = vpack.c.b16 %v580, %v576
      %v697 = vpack.c.b16 %v581, %v577
      %v698 = vpack.c.b16 %v582, %v578
      %v699 = vpack.c.b16 %v587, %v583
      %v700 = vpack.c.b16 %v588, %v584
      %v701 = vpack.c.b16 %v589, %v585
      %v702 = vpack.c.b16 %v590, %v586
      %v703 = vpack.c.b16 %v595, %v591
      %v704 = vpack.c.b16 %v596, %v592
      %v705 = vpack.c.b16 %v597, %v593
      %v706 = vpack.c.b16 %v598, %v594
      %v707 = vpack.c.b16 %v603, %v599
      %v708 = vpack.c.b16 %v604, %v600
      %v709 = vpack.c.b16 %v605, %v601
      %v710 = vpack.c.b16 %v606, %v602
      %v711 = vpack.c.b16 %v611, %v607
      %v712 = vpack.c.b16 %v612, %v608
      %v713 = vpack.c.b16 %v613, %v609
      %v714 = vpack.c.b16 %v614, %v610
      %v715 = vpack.c.b16 %v619, %v615
      %v716 = vpack.c.b16 %v620, %v616
      %v717 = vpack.c.b16 %v621, %v617
      %v718 = vpack.c.b16 %v622, %v618
      %v719 = vpack.c.b16 %v627, %v623
      %v720 = vpack.c.b16 %v628, %v624
      %v721 = vpack.c.b16 %v629, %v625
      %v722 = vpack.c.b16 %v630, %v626
      %v723 = vpack.c.b16 %v635, %v631
      %v724 = vpack.c.b16 %v636, %v632
      %v725 = vpack.c.b16 %v637, %v633
      %v726 = vpack.c.b16 %v638, %v634
      %v727 = vpack.c.b16 %v643, %v639
      %v728 = vpack.c.b16 %v644, %v640
      %v729 = vpack.c.b16 %v645, %v641
      %v730 = vpack.c.b16 %v646, %v642
      %v731 = vpack.c.b16 %v651, %v647
      %v732 = vpack.c.b16 %v652, %v648
      %v733 = vpack.c.b16 %v653, %v649
      %v734 = vpack.c.b16 %v654, %v650
      %v735 = vpack.c.b16 %v659, %v655
      %v736 = vpack.c.b16 %v660, %v656
      %v737 = vpack.c.b16 %v661, %v657
      %v738 = vpack.c.b16 %v662, %v658
      %v739 = vpack.c.b16 %v667, %v663
      %v740 = vpack.c.b16 %v668, %v664
      %v741 = vpack.c.b16 %v669, %v665
      %v742 = vpack.c.b16 %v670, %v666
      %v743 = vpack.c.b16 %v675, %v671
      %v744 = vpack.c.b16 %v676, %v672
      %v745 = vpack.c.b16 %v677, %v673
      %v746 = vpack.c.b16 %v678, %v674
      %v747 = vpack.c.b16 %v683, %v679
      %v748 = vpack.c.b16 %v684, %v680
      %v749 = vpack.c.b16 %v685, %v681
      %v750 = vpack.c.b16 %v686, %v682
      %815 = vmatpush.bf16.msra.mxu0 %v438
      %816 = vmatpush.bf16.msra.mxu0 %v437
      %817 = vmatpush.bf16.msra.mxu0 %v436
      %818 = vmatpush.bf16.msra.mxu0 %v435
      %819 = vmatpush.bf16.msra.mxu0 %v434
      %820 = vmatpush.bf16.msra.mxu0 %v433
      %821 = vmatpush.bf16.msra.mxu0 %v432
      %822 = vmatpush.bf16.msra.mxu0 %v431
      %823 = vmatmul.bf16.gmra.mxu0 %v687
      %v824 = vpop.f32.mrf.mxu0
      %v825 = vadd.f32 0.0, %v824
      %v826 = vpop.f32.mrf.mxu0
      %v827 = vadd.f32 0.0, %v826
      %828 = vmatmul.bf16.gmra.mxu0 %v691
      %v829 = vpop.f32.mrf.mxu0
      %v830 = vadd.f32 0.0, %v829
      %v831 = vpop.f32.mrf.mxu0
      %v832 = vadd.f32 0.0, %v831
      %833 = vmatmul.bf16.gmra.mxu0 %v695
      %v834 = vpop.f32.mrf.mxu0
      %v835 = vadd.f32 0.0, %v834
      %v836 = vpop.f32.mrf.mxu0
      %v837 = vadd.f32 0.0, %v836
      %838 = vmatmul.bf16.gmra.mxu0 %v699
      %v839 = vpop.f32.mrf.mxu0
      %v840 = vadd.f32 0.0, %v839
      %v841 = vpop.f32.mrf.mxu0
      %v842 = vadd.f32 0.0, %v841
      %843 = vmatmul.bf16.gmra.mxu0 %v703
      %v844 = vpop.f32.mrf.mxu0
      %v845 = vadd.f32 0.0, %v844
      %v846 = vpop.f32.mrf.mxu0
      %v847 = vadd.f32 0.0, %v846
      %848 = vmatmul.bf16.gmra.mxu0 %v707
      %v849 = vpop.f32.mrf.mxu0
      %v850 = vadd.f32 0.0, %v849
      %v851 = vpop.f32.mrf.mxu0
      %v852 = vadd.f32 0.0, %v851
      %853 = vmatmul.bf16.gmra.mxu0 %v711
      %v854 = vpop.f32.mrf.mxu0
      %v855 = vadd.f32 0.0, %v854
      %v856 = vpop.f32.mrf.mxu0
      %v857 = vadd.f32 0.0, %v856
      %858 = vmatmul.bf16.gmra.mxu0 %v715
      %v859 = vpop.f32.mrf.mxu0
      %v860 = vadd.f32 0.0, %v859
      %v861 = vpop.f32.mrf.mxu0
      %v862 = vadd.f32 0.0, %v861
      %863 = vmatmul.bf16.gmra.mxu0 %v719
      %v864 = vpop.f32.mrf.mxu0
      %v865 = vadd.f32 0.0, %v864
      %v866 = vpop.f32.mrf.mxu0
      %v867 = vadd.f32 0.0, %v866
      %868 = vmatmul.bf16.gmra.mxu0 %v723
      %v869 = vpop.f32.mrf.mxu0
      %v870 = vadd.f32 0.0, %v869
      %v871 = vpop.f32.mrf.mxu0
      %v872 = vadd.f32 0.0, %v871
      %873 = vmatmul.bf16.gmra.mxu0 %v727
      %v874 = vpop.f32.mrf.mxu0
      %v875 = vadd.f32 0.0, %v874
      %v876 = vpop.f32.mrf.mxu0
      %v877 = vadd.f32 0.0, %v876
      %878 = vmatmul.bf16.gmra.mxu0 %v731
      %v879 = vpop.f32.mrf.mxu0
      %v880 = vadd.f32 0.0, %v879
      %v881 = vpop.f32.mrf.mxu0
      %v882 = vadd.f32 0.0, %v881
      %883 = vmatmul.bf16.gmra.mxu0 %v735
      %v884 = vpop.f32.mrf.mxu0
      %v885 = vadd.f32 0.0, %v884
      %v886 = vpop.f32.mrf.mxu0
      %v887 = vadd.f32 0.0, %v886
      %888 = vmatmul.bf16.gmra.mxu0 %v739
      %v889 = vpop.f32.mrf.mxu0
      %v890 = vadd.f32 0.0, %v889
      %v891 = vpop.f32.mrf.mxu0
      %v892 = vadd.f32 0.0, %v891
      %893 = vmatmul.bf16.gmra.mxu0 %v743
      %v894 = vpop.f32.mrf.mxu0
      %v895 = vadd.f32 0.0, %v894
      %v896 = vpop.f32.mrf.mxu0
      %v897 = vadd.f32 0.0, %v896
      %898 = vmatmul.bf16.gmra.mxu0 %v747
      %v899 = vpop.f32.mrf.mxu0
      %v900 = vadd.f32 0.0, %v899
      %v901 = vpop.f32.mrf.mxu0
      %v902 = vadd.f32 0.0, %v901
      %903 = vdwg.mxu0
      %904 = vmatpush.bf16.msra.mxu0 %v446
      %905 = vmatpush.bf16.msra.mxu0 %v445
      %906 = vmatpush.bf16.msra.mxu0 %v444
      %907 = vmatpush.bf16.msra.mxu0 %v443
      %908 = vmatpush.bf16.msra.mxu0 %v442
      %909 = vmatpush.bf16.msra.mxu0 %v441
      %910 = vmatpush.bf16.msra.mxu0 %v440
      %911 = vmatpush.bf16.msra.mxu0 %v439
      %912 = vmatmul.bf16.gmra.mxu0 %v688
      %v913 = vpop.f32.mrf.mxu0
      %v914 = vadd.f32 %v825, %v913
      %v915 = vpop.f32.mrf.mxu0
      %v916 = vadd.f32 %v827, %v915
      %917 = vmatmul.bf16.gmra.mxu0 %v692
      %v918 = vpop.f32.mrf.mxu0
      %v919 = vadd.f32 %v830, %v918
      %v920 = vpop.f32.mrf.mxu0
      %v921 = vadd.f32 %v832, %v920
      %922 = vmatmul.bf16.gmra.mxu0 %v696
      %v923 = vpop.f32.mrf.mxu0
      %v924 = vadd.f32 %v835, %v923
      %v925 = vpop.f32.mrf.mxu0
      %v926 = vadd.f32 %v837, %v925
      %927 = vmatmul.bf16.gmra.mxu0 %v700
      %v928 = vpop.f32.mrf.mxu0
      %v929 = vadd.f32 %v840, %v928
      %v930 = vpop.f32.mrf.mxu0
      %v931 = vadd.f32 %v842, %v930
      %932 = vmatmul.bf16.gmra.mxu0 %v704
      %v933 = vpop.f32.mrf.mxu0
      %v934 = vadd.f32 %v845, %v933
      %v935 = vpop.f32.mrf.mxu0
      %v936 = vadd.f32 %v847, %v935
      %937 = vmatmul.bf16.gmra.mxu0 %v708
      %v938 = vpop.f32.mrf.mxu0
      %v939 = vadd.f32 %v850, %v938
      %v940 = vpop.f32.mrf.mxu0
      %v941 = vadd.f32 %v852, %v940
      %942 = vmatmul.bf16.gmra.mxu0 %v712
      %v943 = vpop.f32.mrf.mxu0
      %v944 = vadd.f32 %v855, %v943
      %v945 = vpop.f32.mrf.mxu0
      %v946 = vadd.f32 %v857, %v945
      %947 = vmatmul.bf16.gmra.mxu0 %v716
      %v948 = vpop.f32.mrf.mxu0
      %v949 = vadd.f32 %v860, %v948
      %v950 = vpop.f32.mrf.mxu0
      %v951 = vadd.f32 %v862, %v950
      %952 = vmatmul.bf16.gmra.mxu0 %v720
      %v953 = vpop.f32.mrf.mxu0
      %v954 = vadd.f32 %v865, %v953
      %v955 = vpop.f32.mrf.mxu0
      %v956 = vadd.f32 %v867, %v955
      %957 = vmatmul.bf16.gmra.mxu0 %v724
      %v958 = vpop.f32.mrf.mxu0
      %v959 = vadd.f32 %v870, %v958
      %v960 = vpop.f32.mrf.mxu0
      %v961 = vadd.f32 %v872, %v960
      %962 = vmatmul.bf16.gmra.mxu0 %v728
      %v963 = vpop.f32.mrf.mxu0
      %v964 = vadd.f32 %v875, %v963
      %v965 = vpop.f32.mrf.mxu0
      %v966 = vadd.f32 %v877, %v965
      %967 = vmatmul.bf16.gmra.mxu0 %v732
      %v968 = vpop.f32.mrf.mxu0
      %v969 = vadd.f32 %v880, %v968
      %v970 = vpop.f32.mrf.mxu0
      %v971 = vadd.f32 %v882, %v970
      %972 = vmatmul.bf16.gmra.mxu0 %v736
      %v973 = vpop.f32.mrf.mxu0
      %v974 = vadd.f32 %v885, %v973
      %v975 = vpop.f32.mrf.mxu0
      %v976 = vadd.f32 %v887, %v975
      %977 = vmatmul.bf16.gmra.mxu0 %v740
      %v978 = vpop.f32.mrf.mxu0
      %v979 = vadd.f32 %v890, %v978
      %v980 = vpop.f32.mrf.mxu0
      %v981 = vadd.f32 %v892, %v980
      %982 = vmatmul.bf16.gmra.mxu0 %v744
      %v983 = vpop.f32.mrf.mxu0
      %v984 = vadd.f32 %v895, %v983
      %v985 = vpop.f32.mrf.mxu0
      %v986 = vadd.f32 %v897, %v985
      %987 = vmatmul.bf16.gmra.mxu0 %v748
      %v988 = vpop.f32.mrf.mxu0
      %v989 = vadd.f32 %v900, %v988
      %v990 = vpop.f32.mrf.mxu0
      %v991 = vadd.f32 %v902, %v990
      %992 = vdwg.mxu0
      %993 = vmatpush.bf16.msra.mxu0 %v454
      %994 = vmatpush.bf16.msra.mxu0 %v453
      %995 = vmatpush.bf16.msra.mxu0 %v452
      %996 = vmatpush.bf16.msra.mxu0 %v451
      %997 = vmatpush.bf16.msra.mxu0 %v450
      %998 = vmatpush.bf16.msra.mxu0 %v449
      %999 = vmatpush.bf16.msra.mxu0 %v448
      %1000 = vmatpush.bf16.msra.mxu0 %v447
      %1001 = vmatmul.bf16.gmra.mxu0 %v689
      %v1002 = vpop.f32.mrf.mxu0
      %v1003 = vadd.f32 %v914, %v1002
      %v1004 = vpop.f32.mrf.mxu0
      %v1005 = vadd.f32 %v916, %v1004
      %1006 = vmatmul.bf16.gmra.mxu0 %v693
      %v1007 = vpop.f32.mrf.mxu0
      %v1008 = vadd.f32 %v919, %v1007
      %v1009 = vpop.f32.mrf.mxu0
      %v1010 = vadd.f32 %v921, %v1009
      %1011 = vmatmul.bf16.gmra.mxu0 %v697
      %v1012 = vpop.f32.mrf.mxu0
      %v1013 = vadd.f32 %v924, %v1012
      %v1014 = vpop.f32.mrf.mxu0
      %v1015 = vadd.f32 %v926, %v1014
      %1016 = vmatmul.bf16.gmra.mxu0 %v701
      %v1017 = vpop.f32.mrf.mxu0
      %v1018 = vadd.f32 %v929, %v1017
      %v1019 = vpop.f32.mrf.mxu0
      %v1020 = vadd.f32 %v931, %v1019
      %1021 = vmatmul.bf16.gmra.mxu0 %v705
      %v1022 = vpop.f32.mrf.mxu0
      %v1023 = vadd.f32 %v934, %v1022
      %v1024 = vpop.f32.mrf.mxu0
      %v1025 = vadd.f32 %v936, %v1024
      %1026 = vmatmul.bf16.gmra.mxu0 %v709
      %v1027 = vpop.f32.mrf.mxu0
      %v1028 = vadd.f32 %v939, %v1027
      %v1029 = vpop.f32.mrf.mxu0
      %v1030 = vadd.f32 %v941, %v1029
      %1031 = vmatmul.bf16.gmra.mxu0 %v713
      %v1032 = vpop.f32.mrf.mxu0
      %v1033 = vadd.f32 %v944, %v1032
      %v1034 = vpop.f32.mrf.mxu0
      %v1035 = vadd.f32 %v946, %v1034
      %1036 = vmatmul.bf16.gmra.mxu0 %v717
      %v1037 = vpop.f32.mrf.mxu0
      %v1038 = vadd.f32 %v949, %v1037
      %v1039 = vpop.f32.mrf.mxu0
      %v1040 = vadd.f32 %v951, %v1039
      %1041 = vmatmul.bf16.gmra.mxu0 %v721
      %v1042 = vpop.f32.mrf.mxu0
      %v1043 = vadd.f32 %v954, %v1042
      %v1044 = vpop.f32.mrf.mxu0
      %v1045 = vadd.f32 %v956, %v1044
      %1046 = vmatmul.bf16.gmra.mxu0 %v725
      %v1047 = vpop.f32.mrf.mxu0
      %v1048 = vadd.f32 %v959, %v1047
      %v1049 = vpop.f32.mrf.mxu0
      %v1050 = vadd.f32 %v961, %v1049
      %1051 = vmatmul.bf16.gmra.mxu0 %v729
      %v1052 = vpop.f32.mrf.mxu0
      %v1053 = vadd.f32 %v964, %v1052
      %v1054 = vpop.f32.mrf.mxu0
      %v1055 = vadd.f32 %v966, %v1054
      %1056 = vmatmul.bf16.gmra.mxu0 %v733
      %v1057 = vpop.f32.mrf.mxu0
      %v1058 = vadd.f32 %v969, %v1057
      %v1059 = vpop.f32.mrf.mxu0
      %v1060 = vadd.f32 %v971, %v1059
      %1061 = vmatmul.bf16.gmra.mxu0 %v737
      %v1062 = vpop.f32.mrf.mxu0
      %v1063 = vadd.f32 %v974, %v1062
      %v1064 = vpop.f32.mrf.mxu0
      %v1065 = vadd.f32 %v976, %v1064
      %1066 = vmatmul.bf16.gmra.mxu0 %v741
      %v1067 = vpop.f32.mrf.mxu0
      %v1068 = vadd.f32 %v979, %v1067
      %v1069 = vpop.f32.mrf.mxu0
      %v1070 = vadd.f32 %v981, %v1069
      %1071 = vmatmul.bf16.gmra.mxu0 %v745
      %v1072 = vpop.f32.mrf.mxu0
      %v1073 = vadd.f32 %v984, %v1072
      %v1074 = vpop.f32.mrf.mxu0
      %v1075 = vadd.f32 %v986, %v1074
      %1076 = vmatmul.bf16.gmra.mxu0 %v749
      %v1077 = vpop.f32.mrf.mxu0
      %v1078 = vadd.f32 %v989, %v1077
      %v1079 = vpop.f32.mrf.mxu0
      %v1080 = vadd.f32 %v991, %v1079
      %1081 = vdwg.mxu0
      %1082 = vmatpush.bf16.msra.mxu0 %v462
      %1083 = vmatpush.bf16.msra.mxu0 %v461
      %1084 = vmatpush.bf16.msra.mxu0 %v460
      %1085 = vmatpush.bf16.msra.mxu0 %v459
      %1086 = vmatpush.bf16.msra.mxu0 %v458
      %1087 = vmatpush.bf16.msra.mxu0 %v457
      %1088 = vmatpush.bf16.msra.mxu0 %v456
      %1089 = vmatpush.bf16.msra.mxu0 %v455
      %1090 = vmatmul.bf16.gmra.mxu0 %v690
      %v1091 = vpop.f32.mrf.mxu0
      %v1092 = vadd.f32 %v1003, %v1091
      %v1093 = vpop.f32.mrf.mxu0
      %v1094 = vadd.f32 %v1005, %v1093
      %1095 = vmatmul.bf16.gmra.mxu0 %v694
      %v1096 = vpop.f32.mrf.mxu0
      %v1097 = vadd.f32 %v1008, %v1096
      %v1098 = vpop.f32.mrf.mxu0
      %v1099 = vadd.f32 %v1010, %v1098
      %1100 = vmatmul.bf16.gmra.mxu0 %v698
      %v1101 = vpop.f32.mrf.mxu0
      %v1102 = vadd.f32 %v1013, %v1101
      %v1103 = vpop.f32.mrf.mxu0
      %v1104 = vadd.f32 %v1015, %v1103
      %1105 = vmatmul.bf16.gmra.mxu0 %v702
      %v1106 = vpop.f32.mrf.mxu0
      %v1107 = vadd.f32 %v1018, %v1106
      %v1108 = vpop.f32.mrf.mxu0
      %v1109 = vadd.f32 %v1020, %v1108
      %1110 = vmatmul.bf16.gmra.mxu0 %v706
      %v1111 = vpop.f32.mrf.mxu0
      %v1112 = vadd.f32 %v1023, %v1111
      %v1113 = vpop.f32.mrf.mxu0
      %v1114 = vadd.f32 %v1025, %v1113
      %1115 = vmatmul.bf16.gmra.mxu0 %v710
      %v1116 = vpop.f32.mrf.mxu0
      %v1117 = vadd.f32 %v1028, %v1116
      %v1118 = vpop.f32.mrf.mxu0
      %v1119 = vadd.f32 %v1030, %v1118
      %1120 = vmatmul.bf16.gmra.mxu0 %v714
      %v1121 = vpop.f32.mrf.mxu0
      %v1122 = vadd.f32 %v1033, %v1121
      %v1123 = vpop.f32.mrf.mxu0
      %v1124 = vadd.f32 %v1035, %v1123
      %1125 = vmatmul.bf16.gmra.mxu0 %v718
      %v1126 = vpop.f32.mrf.mxu0
      %v1127 = vadd.f32 %v1038, %v1126
      %v1128 = vpop.f32.mrf.mxu0
      %v1129 = vadd.f32 %v1040, %v1128
      %1130 = vmatmul.bf16.gmra.mxu0 %v722
      %v1131 = vpop.f32.mrf.mxu0
      %v1132 = vadd.f32 %v1043, %v1131
      %v1133 = vpop.f32.mrf.mxu0
      %v1134 = vadd.f32 %v1045, %v1133
      %1135 = vmatmul.bf16.gmra.mxu0 %v726
      %v1136 = vpop.f32.mrf.mxu0
      %v1137 = vadd.f32 %v1048, %v1136
      %v1138 = vpop.f32.mrf.mxu0
      %v1139 = vadd.f32 %v1050, %v1138
      %1140 = vmatmul.bf16.gmra.mxu0 %v730
      %v1141 = vpop.f32.mrf.mxu0
      %v1142 = vadd.f32 %v1053, %v1141
      %v1143 = vpop.f32.mrf.mxu0
      %v1144 = vadd.f32 %v1055, %v1143
      %1145 = vmatmul.bf16.gmra.mxu0 %v734
      %v1146 = vpop.f32.mrf.mxu0
      %v1147 = vadd.f32 %v1058, %v1146
      %v1148 = vpop.f32.mrf.mxu0
      %v1149 = vadd.f32 %v1060, %v1148
      %1150 = vmatmul.bf16.gmra.mxu0 %v738
      %v1151 = vpop.f32.mrf.mxu0
      %v1152 = vadd.f32 %v1063, %v1151
      %v1153 = vpop.f32.mrf.mxu0
      %v1154 = vadd.f32 %v1065, %v1153
      %1155 = vmatmul.bf16.gmra.mxu0 %v742
      %v1156 = vpop.f32.mrf.mxu0
      %v1157 = vadd.f32 %v1068, %v1156
      %v1158 = vpop.f32.mrf.mxu0
      %v1159 = vadd.f32 %v1070, %v1158
      %1160 = vmatmul.bf16.gmra.mxu0 %v746
      %v1161 = vpop.f32.mrf.mxu0
      %v1162 = vadd.f32 %v1073, %v1161
      %v1163 = vpop.f32.mrf.mxu0
      %v1164 = vadd.f32 %v1075, %v1163
      %1165 = vmatmul.bf16.gmra.mxu0 %v750
      %v1166 = vpop.f32.mrf.mxu0
      %v1167 = vadd.f32 %v1078, %v1166
      %v1168 = vpop.f32.mrf.mxu0
      %v1169 = vadd.f32 %v1080, %v1168
      %1170 = vdwg.mxu0
      %v1171 = vadd.f32 %v463, %v1092
      %v1172 = vadd.f32 %v464, %v1094
      %v1173 = vadd.f32 %v465, %v1097
      %v1174 = vadd.f32 %v466, %v1099
      %v1175 = vadd.f32 %v467, %v1102
      %v1176 = vadd.f32 %v468, %v1104
      %v1177 = vadd.f32 %v469, %v1107
      %v1178 = vadd.f32 %v470, %v1109
      %v1179 = vadd.f32 %v471, %v1112
      %v1180 = vadd.f32 %v472, %v1114
      %v1181 = vadd.f32 %v473, %v1117
      %v1182 = vadd.f32 %v474, %v1119
      %v1183 = vadd.f32 %v475, %v1122
      %v1184 = vadd.f32 %v476, %v1124
      %v1185 = vadd.f32 %v477, %v1127
      %v1186 = vadd.f32 %v478, %v1129
      %v1187 = vadd.f32 %v479, %v1132
      %v1188 = vadd.f32 %v480, %v1134
      %v1189 = vadd.f32 %v481, %v1137
      %v1190 = vadd.f32 %v482, %v1139
      %v1191 = vadd.f32 %v483, %v1142
      %v1192 = vadd.f32 %v484, %v1144
      %v1193 = vadd.f32 %v485, %v1147
      %v1194 = vadd.f32 %v486, %v1149
      %v1195 = vadd.f32 %v487, %v1152
      %v1196 = vadd.f32 %v488, %v1154
      %v1197 = vadd.f32 %v489, %v1157
      %v1198 = vadd.f32 %v490, %v1159
      %v1199 = vadd.f32 %v491, %v1162
      %v1200 = vadd.f32 %v492, %v1164
      %v1201 = vadd.f32 %v493, %v1167
      %v1202 = vadd.f32 %v494, %v1169
      %1203 = vst [vmem:[#allocation2] sm:$0xff] %v1171
      %1204 = vst [vmem:[#allocation2 + $0x8] sm:$0xff] %v1172
      %1205 = vst [vmem:[#allocation2 + $0x10] sm:$0xff] %v1173
      %1206 = vst [vmem:[#allocation2 + $0x18] sm:$0xff] %v1174
      %1207 = vst [vmem:[#allocation2 + $0x20] sm:$0xff] %v1175
      %1208 = vst [vmem:[#allocation2 + $0x28] sm:$0xff] %v1176
      %1209 = vst [vmem:[#allocation2 + $0x30] sm:$0xff] %v1177
      %1210 = vst [vmem:[#allocation2 + $0x38] sm:$0xff] %v1178
      %1211 = vst [vmem:[#allocation2 + $0x40] sm:$0xff] %v1179
      %1212 = vst [vmem:[#allocation2 + $0x48] sm:$0xff] %v1180
      %1213 = vst [vmem:[#allocation2 + $0x50] sm:$0xff] %v1181
      %1214 = vst [vmem:[#allocation2 + $0x58] sm:$0xff] %v1182
      %1215 = vst [vmem:[#allocation2 + $0x60] sm:$0xff] %v1183
      %1216 = vst [vmem:[#allocation2 + $0x68] sm:$0xff] %v1184
      %1217 = vst [vmem:[#allocation2 + $0x70] sm:$0xff] %v1185
      %1218 = vst [vmem:[#allocation2 + $0x78] sm:$0xff] %v1186
      %1219 = vst [vmem:[#allocation2 + $0x80] sm:$0xff] %v1187
      %1220 = vst [vmem:[#allocation2 + $0x88] sm:$0xff] %v1188
      %1221 = vst [vmem:[#allocation2 + $0x90] sm:$0xff] %v1189
      %1222 = vst [vmem:[#allocation2 + $0x98] sm:$0xff] %v1190
      %1223 = vst [vmem:[#allocation2 + $0xa0] sm:$0xff] %v1191
      %1224 = vst [vmem:[#allocation2 + $0xa8] sm:$0xff] %v1192
      %1225 = vst [vmem:[#allocation2 + $0xb0] sm:$0xff] %v1193
      %1226 = vst [vmem:[#allocation2 + $0xb8] sm:$0xff] %v1194
      %1227 = vst [vmem:[#allocation2 + $0xc0] sm:$0xff] %v1195
      %1228 = vst [vmem:[#allocation2 + $0xc8] sm:$0xff] %v1196
      %1229 = vst [vmem:[#allocation2 + $0xd0] sm:$0xff] %v1197
      %1230 = vst [vmem:[#allocation2 + $0xd8] sm:$0xff] %v1198
      %1231 = vst [vmem:[#allocation2 + $0xe0] sm:$0xff] %v1199
      %1232 = vst [vmem:[#allocation2 + $0xe8] sm:$0xff] %v1200
      %1233 = vst [vmem:[#allocation2 + $0xf0] sm:$0xff] %v1201
      %1234 = vst [vmem:[#allocation2 + $0xf8] sm:$0xff] %v1202
      // Predicated region
      $region37: #{jvp__.2} parent=31 // pred_check
        %p1235 = pneg %p267
      $region38: #{jvp__.2} parent=31 // pred_check_branch
        %1237 = sbr.rel (%p1235) target = $region40
      $region39: #{jvp__.2} parent=31 // pred_region
        %v1238 = vld [vmem:[#allocation2] sm:$0xff]
        %v1239 = vld [vmem:[#allocation2 + $0x8] sm:$0xff]
        %v1240 = vld [vmem:[#allocation2 + $0x10] sm:$0xff]
        %v1241 = vld [vmem:[#allocation2 + $0x18] sm:$0xff]
        %v1242 = vld [vmem:[#allocation2 + $0x20] sm:$0xff]
        %v1243 = vld [vmem:[#allocation2 + $0x28] sm:$0xff]
        %v1244 = vld [vmem:[#allocation2 + $0x30] sm:$0xff]
        %v1245 = vld [vmem:[#allocation2 + $0x38] sm:$0xff]
        %v1246 = vld [vmem:[#allocation2 + $0x40] sm:$0xff]
        %v1247 = vld [vmem:[#allocation2 + $0x48] sm:$0xff]
        %v1248 = vld [vmem:[#allocation2 + $0x50] sm:$0xff]
        %v1249 = vld [vmem:[#allocation2 + $0x58] sm:$0xff]
        %v1250 = vld [vmem:[#allocation2 + $0x60] sm:$0xff]
        %v1251 = vld [vmem:[#allocation2 + $0x68] sm:$0xff]
        %v1252 = vld [vmem:[#allocation2 + $0x70] sm:$0xff]
        %v1253 = vld [vmem:[#allocation2 + $0x78] sm:$0xff]
        %v1254 = vld [vmem:[#allocation2 + $0x80] sm:$0xff]
        %v1255 = vld [vmem:[#allocation2 + $0x88] sm:$0xff]
        %v1256 = vld [vmem:[#allocation2 + $0x90] sm:$0xff]
        %v1257 = vld [vmem:[#allocation2 + $0x98] sm:$0xff]
        %v1258 = vld [vmem:[#allocation2 + $0xa0] sm:$0xff]
        %v1259 = vld [vmem:[#allocation2 + $0xa8] sm:$0xff]
        %v1260 = vld [vmem:[#allocation2 + $0xb0] sm:$0xff]
        %v1261 = vld [vmem:[#allocation2 + $0xb8] sm:$0xff]
        %v1262 = vld [vmem:[#allocation2 + $0xc0] sm:$0xff]
        %v1263 = vld [vmem:[#allocation2 + $0xc8] sm:$0xff]
        %v1264 = vld [vmem:[#allocation2 + $0xd0] sm:$0xff]
        %v1265 = vld [vmem:[#allocation2 + $0xd8] sm:$0xff]
        %v1266 = vld [vmem:[#allocation2 + $0xe0] sm:$0xff]
        %v1267 = vld [vmem:[#allocation2 + $0xe8] sm:$0xff]
        %v1268 = vld [vmem:[#allocation2 + $0xf0] sm:$0xff]
        %v1269 = vld [vmem:[#allocation2 + $0xf8] sm:$0xff]
        %v1270 = vld [vmem:[%s257] sm:$0x1]
        %v1272 = vperm.slane %v1270, 0
        %v1274 = vadd.f32 %v1238, %v1272
        %v1275 = vadd.f32 %v1239, %v1272
        %v1276 = vadd.f32 %v1240, %v1272
        %v1277 = vadd.f32 %v1241, %v1272
        %v1278 = vadd.f32 %v1242, %v1272
        %v1279 = vadd.f32 %v1243, %v1272
        %v1280 = vadd.f32 %v1244, %v1272
        %v1281 = vadd.f32 %v1245, %v1272
        %v1282 = vadd.f32 %v1246, %v1272
        %v1283 = vadd.f32 %v1247, %v1272
        %v1284 = vadd.f32 %v1248, %v1272
        %v1285 = vadd.f32 %v1249, %v1272
        %v1286 = vadd.f32 %v1250, %v1272
        %v1287 = vadd.f32 %v1251, %v1272
        %v1288 = vadd.f32 %v1252, %v1272
        %v1289 = vadd.f32 %v1253, %v1272
        %v1290 = vadd.f32 %v1254, %v1272
        %v1291 = vadd.f32 %v1255, %v1272
        %v1292 = vadd.f32 %v1256, %v1272
        %v1293 = vadd.f32 %v1257, %v1272
        %v1294 = vadd.f32 %v1258, %v1272
        %v1295 = vadd.f32 %v1259, %v1272
        %v1296 = vadd.f32 %v1260, %v1272
        %v1297 = vadd.f32 %v1261, %v1272
        %v1298 = vadd.f32 %v1262, %v1272
        %v1299 = vadd.f32 %v1263, %v1272
        %v1300 = vadd.f32 %v1264, %v1272
        %v1301 = vadd.f32 %v1265, %v1272
        %v1302 = vadd.f32 %v1266, %v1272
        %v1303 = vadd.f32 %v1267, %v1272
        %v1304 = vadd.f32 %v1268, %v1272
        %v1305 = vadd.f32 %v1269, %v1272
        %v1306 = vmax.f32 %v1274, 0.0
        %v1307 = vmax.f32 %v1275, 0.0
        %v1308 = vmax.f32 %v1276, 0.0
        %v1309 = vmax.f32 %v1277, 0.0
        %v1310 = vmax.f32 %v1278, 0.0
        %v1311 = vmax.f32 %v1279, 0.0
        %v1312 = vmax.f32 %v1280, 0.0
        %v1313 = vmax.f32 %v1281, 0.0
        %v1314 = vmax.f32 %v1282, 0.0
        %v1315 = vmax.f32 %v1283, 0.0
        %v1316 = vmax.f32 %v1284, 0.0
        %v1317 = vmax.f32 %v1285, 0.0
        %v1318 = vmax.f32 %v1286, 0.0
        %v1319 = vmax.f32 %v1287, 0.0
        %v1320 = vmax.f32 %v1288, 0.0
        %v1321 = vmax.f32 %v1289, 0.0
        %v1322 = vmax.f32 %v1290, 0.0
        %v1323 = vmax.f32 %v1291, 0.0
        %v1324 = vmax.f32 %v1292, 0.0
        %v1325 = vmax.f32 %v1293, 0.0
        %v1326 = vmax.f32 %v1294, 0.0
        %v1327 = vmax.f32 %v1295, 0.0
        %v1328 = vmax.f32 %v1296, 0.0
        %v1329 = vmax.f32 %v1297, 0.0
        %v1330 = vmax.f32 %v1298, 0.0
        %v1331 = vmax.f32 %v1299, 0.0
        %v1332 = vmax.f32 %v1300, 0.0
        %v1333 = vmax.f32 %v1301, 0.0
        %v1334 = vmax.f32 %v1302, 0.0
        %v1335 = vmax.f32 %v1303, 0.0
        %v1336 = vmax.f32 %v1304, 0.0
        %v1337 = vmax.f32 %v1305, 0.0
        %1338 = vst [vmem:[%s265] sm:$0xff] %v1306
        %1339 = vst [vmem:[%s265 + $0x8] sm:$0xff] %v1307
        %1340 = vst [vmem:[%s265 + $0x10] sm:$0xff] %v1308
        %1341 = vst [vmem:[%s265 + $0x18] sm:$0xff] %v1309
        %1342 = vst [vmem:[%s265 + $0x20] sm:$0xff] %v1310
        %1343 = vst [vmem:[%s265 + $0x28] sm:$0xff] %v1311
        %1344 = vst [vmem:[%s265 + $0x30] sm:$0xff] %v1312
        %1345 = vst [vmem:[%s265 + $0x38] sm:$0xff] %v1313
        %1346 = vst [vmem:[%s265 + $0x40] sm:$0xff] %v1314
        %1347 = vst [vmem:[%s265 + $0x48] sm:$0xff] %v1315
        %1348 = vst [vmem:[%s265 + $0x50] sm:$0xff] %v1316
        %1349 = vst [vmem:[%s265 + $0x58] sm:$0xff] %v1317
        %1350 = vst [vmem:[%s265 + $0x60] sm:$0xff] %v1318
        %1351 = vst [vmem:[%s265 + $0x68] sm:$0xff] %v1319
        %1352 = vst [vmem:[%s265 + $0x70] sm:$0xff] %v1320
        %1353 = vst [vmem:[%s265 + $0x78] sm:$0xff] %v1321
        %1354 = vst [vmem:[%s265 + $0x80] sm:$0xff] %v1322
        %1355 = vst [vmem:[%s265 + $0x88] sm:$0xff] %v1323
        %1356 = vst [vmem:[%s265 + $0x90] sm:$0xff] %v1324
        %1357 = vst [vmem:[%s265 + $0x98] sm:$0xff] %v1325
        %1358 = vst [vmem:[%s265 + $0xa0] sm:$0xff] %v1326
        %1359 = vst [vmem:[%s265 + $0xa8] sm:$0xff] %v1327
        %1360 = vst [vmem:[%s265 + $0xb0] sm:$0xff] %v1328
        %1361 = vst [vmem:[%s265 + $0xb8] sm:$0xff] %v1329
        %1362 = vst [vmem:[%s265 + $0xc0] sm:$0xff] %v1330
        %1363 = vst [vmem:[%s265 + $0xc8] sm:$0xff] %v1331
        %1364 = vst [vmem:[%s265 + $0xd0] sm:$0xff] %v1332
        %1365 = vst [vmem:[%s265 + $0xd8] sm:$0xff] %v1333
        %1366 = vst [vmem:[%s265 + $0xe0] sm:$0xff] %v1334
        %1367 = vst [vmem:[%s265 + $0xe8] sm:$0xff] %v1335
        %1368 = vst [vmem:[%s265 + $0xf0] sm:$0xff] %v1336
        %1369 = vst [vmem:[%s265 + $0xf8] sm:$0xff] %v1337
      $region40: #{jvp__.2} parent=31 // pred_fallthru
        _
      %s1370 = smul.u32 32, %s19
      %p1371 = scmp.lt.s32.totalorder %s1370, 63
      %s1372 = scalar_select %p1371, %s1370, 63
      %p1373 = scmp.lt.s32.totalorder %s20, 0
      %s1374 = scalar_select %p1373, %s20, 0
      %s1375 = sadd.s32 %s1374, %s1372
      %s1376 = smul.addr %s1375, 8
      %s1377 = scalar_lea.vmem %s3, %s1376
      // Predicated region
      $region41: #{jvp__.2} parent=31 // pred_check
        %p1378 = pneg %p135
      $region42: #{jvp__.2} parent=31 // pred_check_branch
        %1380 = sbr.rel (%p1378) target = $region44
      $region43: #{jvp__.2} parent=31 // pred_region
        %s1381 = smul.u32 32, %s19
      $region44: #{jvp__.2} parent=31 // pred_fallthru
        _
    $region32: #{jvp__.2} parent=5 // pred_fallthru
      _
    %p1382 = scmp.le.s32.totalorder 2, %s9
    // Predicated region
    $region45: #{jvp__.2} parent=5 // pred_check
      %p1383 = pneg %p1382
    $region46: #{jvp__.2} parent=5 // pred_check_branch
      %1385 = sbr.rel (%p1383) target = $region48
    $region47: #{jvp__.2} parent=5 // pred_region
      %s1386 = ssub.s32 %s9, 2
      // Predicated region
      $region49: #{jvp__.2} parent=47 // pred_check
        %p1387 = pneg %p141
      $region50: #{jvp__.2} parent=47 // pred_check_branch
        %1389 = sbr.rel (%p1387) target = $region52
      $region51: #{jvp__.2} parent=47 // pred_region
        %s1390 = smul.u32 32, %s22
        %p1391 = scmp.lt.s32.totalorder %s1390, 63
        %s1392 = scalar_select %p1391, %s1390, 63
        %p1393 = scmp.lt.s32.totalorder %s23, 0
        %s1394 = scalar_select %p1393, %s23, 0
        %s1395 = sadd.s32 %s1394, %s1392
        %s1396 = smul.addr %s1395, 8
        %s1397 = scalar_lea.vmem %s3, %s1396
      $region52: #{jvp__.2} parent=47 // pred_fallthru
        _
    $region48: #{jvp__.2} parent=5 // pred_fallthru
      _
  $region6: #{jvp__.2} parent=0 // loop_footer
    %s13 = sadd.s32 1, %s9
  $region7: #{jvp__.2} parent=0 // loop_footer_branch
    %8 = sbr.rel target = $region3
  $region8: #{jvp__.2} parent=0 // loop_exit
    _

// kernel: closed_call.2
$region0: #{closed_call.2}
  #allocation0 [shape = 'u32[]', space=smem, size = 0x4, offset = 0x4, fixed_abs, tag = 'smem constant byte address 0x4 - core index']
  #allocation1 [shape = 'u32[72,128]{1,0:T(1,128)}', space=vmem, size = 0x9000, scoped, tag = 'internal scratch']
  %s0 = inlined_call_operand.vmem [shape: f32[2], index: 0, kind: input, shape index: {}]
  %s1 = inlined_call_operand.vmem [shape: f32[32,128], index: 1, kind: input, shape index: {}, may-alias: {1,5}]
  %s2 = inlined_call_operand.vmem [shape: f32[32,128], index: 2, kind: input, shape index: {}]
  %s3 = inlined_call_operand.vmem [shape: f32[32,128], index: 3, kind: input, shape index: {}, may-alias: {3,6}]
  %s4 = inlined_call_operand.vmem [shape: f32[32,128], index: 4, kind: input, shape index: {}, may-alias: {4,7}]
  %s5 = inlined_call_operand.vmem [shape: f32[32,128], index: 5, kind: output, shape index: {0}, may-alias: {1,5}]
  %s6 = inlined_call_operand.vmem [shape: f32[32,128], index: 6, kind: output, shape index: {1}, may-alias: {3,6}]
  %s7 = inlined_call_operand.vmem [shape: f32[32,128], index: 7, kind: output, shape index: {2}, may-alias: {4,7}]
  %8 = xla_tuple %s5, %s6, %s7
  %s9 = sld [smem:[#allocation0]]
  $region50: #{closed_call.2} parent=0
    _
  %s11 = ssub.s32 1, %s9
  %s12 = scalar_select 0, %s11, %s9
  $region1: #{closed_call.2} parent=0
    #allocation2 [shape = 'u8[512]{0}', space=smem, size = 0x200, scoped, tag = 'input window, operand 0, single buffered']
    #allocation3 [shape = 's32[1]{0}', space=sflag, size = 0x4, scoped, tag = 'scoped memory for closed_call.2']
    %13 = vsyncpa [#allocation3], 0
    // Predicated region
    $region2: #{closed_call.2} parent=1 // pred_check
      _
    $region3: #{closed_call.2} parent=1 // pred_check_branch
      %15 = sbr.rel (0) target = $region5
    $region4: #{closed_call.2} parent=1 // pred_region
      %17 = vsyncadd [#allocation3], 0
      %s19 = sshll.u32 %s0, 4
      %s20 = int_to_ptr.vmem [resolvable:$true] %s19
      %22 = dma.vmem_to_smem %s20, 16, [#allocation2], [#allocation3]
    $region5: #{closed_call.2} parent=1 // pred_fallthru
      _
    // Predicated region
    $region6: #{closed_call.2} parent=1 // pred_check
      _
    $region7: #{closed_call.2} parent=1 // pred_check_branch
      %24 = sbr.rel (0) target = $region9
    $region8: #{closed_call.2} parent=1 // pred_region
      _
    $region9: #{closed_call.2} parent=1 // pred_fallthru
      _
    // Predicated region
    $region10: #{closed_call.2} parent=1 // pred_check
      _
    $region11: #{closed_call.2} parent=1 // pred_check_branch
      %26 = sbr.rel (0) target = $region13
    $region12: #{closed_call.2} parent=1 // pred_region
      _
    $region13: #{closed_call.2} parent=1 // pred_fallthru
      _
    // Predicated region
    $region14: #{closed_call.2} parent=1 // pred_check
      _
    $region15: #{closed_call.2} parent=1 // pred_check_branch
      %28 = sbr.rel (0) target = $region17
    $region16: #{closed_call.2} parent=1 // pred_region
      _
    $region17: #{closed_call.2} parent=1 // pred_fallthru
      _
    // Predicated region
    $region18: #{closed_call.2} parent=1 // pred_check
      _
    $region19: #{closed_call.2} parent=1 // pred_check_branch
      %30 = sbr.rel (0) target = $region21
    $region20: #{closed_call.2} parent=1 // pred_region
      _
    $region21: #{closed_call.2} parent=1 // pred_fallthru
      _
    // Predicated region
    $region22: #{closed_call.2} parent=1 // pred_check
      _
    $region23: #{closed_call.2} parent=1 // pred_check_branch
      %32 = sbr.rel (0) target = $region25
    $region24: #{closed_call.2} parent=1 // pred_region
      %34 = dma.done [#allocation3], 16
    $region25: #{closed_call.2} parent=1 // pred_fallthru
      _
    %35 = sfence
    %s36 = sld [smem:[#allocation2]]
    %s37 = sld [smem:[#allocation2 + $0x1]]
    %v38 = vld [vmem:[%s2] sm:$0xff]
    %v39 = vld [vmem:[%s2 + $0x8] sm:$0xff]
    %v40 = vld [vmem:[%s2 + $0x10] sm:$0xff]
    %v41 = vld [vmem:[%s2 + $0x18] sm:$0xff]
    %v42 = vld [vmem:[%s3] sm:$0xff]
    %v43 = vld [vmem:[%s3 + $0x8] sm:$0xff]
    %v44 = vld [vmem:[%s3 + $0x10] sm:$0xff]
    %v45 = vld [vmem:[%s3 + $0x18] sm:$0xff]
    %v46 = vmul.f32 %v42, 0.9
    %v47 = vmul.f32 %v43, 0.9
    %v48 = vmul.f32 %v44, 0.9
    %v49 = vmul.f32 %v45, 0.9
    %v50 = vmul.f32 %v38, 0.1
    %v51 = vmul.f32 %v39, 0.1
    %v52 = vmul.f32 %v40, 0.1
    %v53 = vmul.f32 %v41, 0.1
    %v54 = vadd.f32 %v46, %v50
    %v55 = vadd.f32 %v47, %v51
    %v56 = vadd.f32 %v48, %v52
    %v57 = vadd.f32 %v49, %v53
    %v58 = vld [vmem:[%s4] sm:$0xff]
    %v59 = vld [vmem:[%s4 + $0x8] sm:$0xff]
    %v60 = vld [vmem:[%s4 + $0x10] sm:$0xff]
    %v61 = vld [vmem:[%s4 + $0x18] sm:$0xff]
    %v62 = vmul.f32 %v58, 0.999
    %v63 = vmul.f32 %v59, 0.999
    %v64 = vmul.f32 %v60, 0.999
    %v65 = vmul.f32 %v61, 0.999
    %v66 = vmul.f32 %v38, 0.001
    %v67 = vmul.f32 %v39, 0.001
    %v68 = vmul.f32 %v40, 0.001
    %v69 = vmul.f32 %v41, 0.001
    %v70 = vmul.f32 %v66, %v38
    %v71 = vmul.f32 %v67, %v39
    %v72 = vmul.f32 %v68, %v40
    %v73 = vmul.f32 %v69, %v41
    %v74 = vadd.f32 %v62, %v70
    %v75 = vadd.f32 %v63, %v71
    %v76 = vadd.f32 %v64, %v72
    %v77 = vadd.f32 %v65, %v73
    %v78 = vstv %s36
    %v79 = vmul.f32 %v54, %v78
    %v80 = vmul.f32 %v55, %v78
    %v81 = vmul.f32 %v56, %v78
    %v82 = vmul.f32 %v57, %v78
    %v83 = vmul.f32 %v79, 0.01
    %v84 = vmul.f32 %v80, 0.01
    %v85 = vmul.f32 %v81, 0.01
    %v86 = vmul.f32 %v82, 0.01
    %v87 = vstv %s37
    %v88 = vmul.f32 %v74, %v87
    %v89 = vmul.f32 %v75, %v87
    %v90 = vmul.f32 %v76, %v87
    %v91 = vmul.f32 %v77, %v87
    %v92 = vrsqrt.pop %v88
    %v93 = vmul.f32 %v92, %v88
    %v94 = vmul.f32 %v93, %v92
    %v95 = vmul.f32 0.5, %v94
    %v96 = vsub.f32 1.5, %v95
    %v97 = vmul.f32 %v92, %v96
    %v98 = vmul.f32 %v88, %v97
    %vm99 = vcmp.eq.f32.partialorder %v88, inf
    %v100 = vsel %vm99, %v88, %v98
    %vm101 = vcmp.eq.f32.partialorder %v88, 0.0
    %v102 = vand.u32 %v88, 2147483648
    %v103 = vsel %vm101, %v102, %v100
    %v104 = vrsqrt.pop %v89
    %v105 = vmul.f32 %v104, %v89
    %v106 = vmul.f32 %v105, %v104
    %v107 = vmul.f32 0.5, %v106
    %v108 = vsub.f32 1.5, %v107
    %v109 = vmul.f32 %v104, %v108
    %v110 = vmul.f32 %v89, %v109
    %vm111 = vcmp.eq.f32.partialorder %v89, inf
    %v112 = vsel %vm111, %v89, %v110
    %vm113 = vcmp.eq.f32.partialorder %v89, 0.0
    %v114 = vand.u32 %v89, 2147483648
    %v115 = vsel %vm113, %v114, %v112
    %v116 = vrsqrt.pop %v90
    %v117 = vmul.f32 %v116, %v90
    %v118 = vmul.f32 %v117, %v116
    %v119 = vmul.f32 0.5, %v118
    %v120 = vsub.f32 1.5, %v119
    %v121 = vmul.f32 %v116, %v120
    %v122 = vmul.f32 %v90, %v121
    %vm123 = vcmp.eq.f32.partialorder %v90, inf
    %v124 = vsel %vm123, %v90, %v122
    %vm125 = vcmp.eq.f32.partialorder %v90, 0.0
    %v126 = vand.u32 %v90, 2147483648
    %v127 = vsel %vm125, %v126, %v124
    %v128 = vrsqrt.pop %v91
    %v129 = vmul.f32 %v128, %v91
    %v130 = vmul.f32 %v129, %v128
    %v131 = vmul.f32 0.5, %v130
    %v132 = vsub.f32 1.5, %v131
    %v133 = vmul.f32 %v128, %v132
    %v134 = vmul.f32 %v91, %v133
    %vm135 = vcmp.eq.f32.partialorder %v91, inf
    %v136 = vsel %vm135, %v91, %v134
    %vm137 = vcmp.eq.f32.partialorder %v91, 0.0
    %v138 = vand.u32 %v91, 2147483648
    %v139 = vsel %vm137, %v138, %v136
    %v140 = vadd.f32 %v103, 1e-08
    %v141 = vadd.f32 %v115, 1e-08
    %v142 = vadd.f32 %v127, 1e-08
    %v143 = vadd.f32 %v139, 1e-08
    %v144 = vrcp.pop %v140
    %v145 = vmul.f32 %v140, %v144
    %v146 = vsub.f32 1.0, %v145
    %v147 = vmul.f32 %v144, %v146
    %v148 = vadd.f32 %v144, %v147
    %vm149 = vweird.f32 %v140
    %vm150 = vweird.f32 %v144
    %vm151 = vmor %vm149, %vm150
    %v152 = vsel %vm151, %v144, %v148
    %v153 = vand.u32 2147483647, %v140
    %vm154 = vcmp.eq.f32.partialorder %v153, 8.507059e+37
    %v155 = vand.u32 %v140, 2147483648
    %v156 = vor.u32 1.1754944e-38, %v155
    %v157 = vsel %vm154, %v156, %v152
    %v158 = vmul.f32 %v83, %v157
    %v159 = vrcp.pop %v141
    %v160 = vmul.f32 %v141, %v159
    %v161 = vsub.f32 1.0, %v160
    %v162 = vmul.f32 %v159, %v161
    %v163 = vadd.f32 %v159, %v162
    %vm164 = vweird.f32 %v141
    %vm165 = vweird.f32 %v159
    %vm166 = vmor %vm164, %vm165
    %v167 = vsel %vm166, %v159, %v163
    %v168 = vand.u32 2147483647, %v141
    %vm169 = vcmp.eq.f32.partialorder %v168, 8.507059e+37
    %v170 = vand.u32 %v141, 2147483648
    %v171 = vor.u32 1.1754944e-38, %v170
    %v172 = vsel %vm169, %v171, %v167
    %v173 = vmul.f32 %v84, %v172
    %v174 = vrcp.pop %v142
    %v175 = vmul.f32 %v142, %v174
    %v176 = vsub.f32 1.0, %v175
    %v177 = vmul.f32 %v174, %v176
    %v178 = vadd.f32 %v174, %v177
    %vm179 = vweird.f32 %v142
    %vm180 = vweird.f32 %v174
    %vm181 = vmor %vm179, %vm180
    %v182 = vsel %vm181, %v174, %v178
    %v183 = vand.u32 2147483647, %v142
    %vm184 = vcmp.eq.f32.partialorder %v183, 8.507059e+37
    %v185 = vand.u32 %v142, 2147483648
    %v186 = vor.u32 1.1754944e-38, %v185
    %v187 = vsel %vm184, %v186, %v182
    %v188 = vmul.f32 %v85, %v187
    %v189 = vrcp.pop %v143
    %v190 = vmul.f32 %v143, %v189
    %v191 = vsub.f32 1.0, %v190
    %v192 = vmul.f32 %v189, %v191
    %v193 = vadd.f32 %v189, %v192
    %vm194 = vweird.f32 %v143
    %vm195 = vweird.f32 %v189
    %vm196 = vmor %vm194, %vm195
    %v197 = vsel %vm196, %v189, %v193
    %v198 = vand.u32 2147483647, %v143
    %vm199 = vcmp.eq.f32.partialorder %v198, 8.507059e+37
    %v200 = vand.u32 %v143, 2147483648
    %v201 = vor.u32 1.1754944e-38, %v200
    %v202 = vsel %vm199, %v201, %v197
    %v203 = vmul.f32 %v86, %v202
    %v204 = vld [vmem:[%s1] sm:$0xff]
    %v205 = vld [vmem:[%s1 + $0x8] sm:$0xff]
    %v206 = vld [vmem:[%s1 + $0x10] sm:$0xff]
    %v207 = vld [vmem:[%s1 + $0x18] sm:$0xff]
    %v208 = vsub.f32 %v204, %v158
    %v209 = vsub.f32 %v205, %v173
    %v210 = vsub.f32 %v206, %v188
    %v211 = vsub.f32 %v207, %v203
    %v212 = vmax.f32 %v208, 0.0
    %v213 = vmax.f32 %v209, 0.0
    %v214 = vmax.f32 %v210, 0.0
    %v215 = vmax.f32 %v211, 0.0
    %v216 = vmin.f32 %v212, 1.0
    %v217 = vmin.f32 %v213, 1.0
    %v218 = vmin.f32 %v214, 1.0
    %v219 = vmin.f32 %v215, 1.0
    %220 = vst [vmem:[%s5] sm:$0xff] %v216
    %221 = vst [vmem:[%s5 + $0x8] sm:$0xff] %v217
    %222 = vst [vmem:[%s5 + $0x10] sm:$0xff] %v218
    %223 = vst [vmem:[%s5 + $0x18] sm:$0xff] %v219
    %224 = vst [vmem:[%s6] sm:$0xff] %v54
    %225 = vst [vmem:[%s6 + $0x8] sm:$0xff] %v55
    %226 = vst [vmem:[%s6 + $0x10] sm:$0xff] %v56
    %227 = vst [vmem:[%s6 + $0x18] sm:$0xff] %v57
    %228 = vst [vmem:[%s7] sm:$0xff] %v74
    %229 = vst [vmem:[%s7 + $0x8] sm:$0xff] %v75
    %230 = vst [vmem:[%s7 + $0x10] sm:$0xff] %v76
    %231 = vst [vmem:[%s7 + $0x18] sm:$0xff] %v77
    // Predicated region
    $region26: #{closed_call.2} parent=1 // pred_check
      _
    $region27: #{closed_call.2} parent=1 // pred_check_branch
      %233 = sbr.rel (0) target = $region29
    $region28: #{closed_call.2} parent=1 // pred_region
      _
    $region29: #{closed_call.2} parent=1 // pred_fallthru
      _
    // Predicated region
    $region30: #{closed_call.2} parent=1 // pred_check
      _
    $region31: #{closed_call.2} parent=1 // pred_check_branch
      %235 = sbr.rel (0) target = $region33
    $region32: #{closed_call.2} parent=1 // pred_region
      _
    $region33: #{closed_call.2} parent=1 // pred_fallthru
      _
    // Predicated region
    $region34: #{closed_call.2} parent=1 // pred_check
      _
    $region35: #{closed_call.2} parent=1 // pred_check_branch
      %237 = sbr.rel (0) target = $region37
    $region36: #{closed_call.2} parent=1 // pred_region
      _
    $region37: #{closed_call.2} parent=1 // pred_fallthru
      _
    // Predicated region
    $region38: #{closed_call.2} parent=1 // pred_check
      _
    $region39: #{closed_call.2} parent=1 // pred_check_branch
      %239 = sbr.rel (0) target = $region41
    $region40: #{closed_call.2} parent=1 // pred_region
      _
    $region41: #{closed_call.2} parent=1 // pred_fallthru
      _
    // Predicated region
    $region42: #{closed_call.2} parent=1 // pred_check
      _
    $region43: #{closed_call.2} parent=1 // pred_check_branch
      %241 = sbr.rel (0) target = $region45
    $region44: #{closed_call.2} parent=1 // pred_region
      _
    $region45: #{closed_call.2} parent=1 // pred_fallthru
      _
    // Predicated region
    $region46: #{closed_call.2} parent=1 // pred_check
      _
    $region47: #{closed_call.2} parent=1 // pred_check_branch
      %243 = sbr.rel (0) target = $region49
    $region48: #{closed_call.2} parent=1 // pred_region
      _
    $region49: #{closed_call.2} parent=1 // pred_fallthru
      _
    %244 = vsyncpa [#allocation3], 1

</llo_original>
